<compile_context>
chip_gen: v7x
topology: tpu7x:2x2x1
jax: 0.10.0
libtpu: 0.0.40
codegen_flags: <defaults>
</compile_context>

<pallas_src>
import jax
import jax.numpy as jnp
from jax.experimental import pallas as pl
from jax.experimental.pallas import tpu as pltpu


def mlp_kernel(x_ref, w1_ref, b1_ref, w2_ref, b2_ref, w3_ref, b3_ref, o_ref):
    # x_ref : (TB, D)    f32   VMEM  (cast to bf16 in-kernel, hidden under pipeline)
    # w1_ref: (D, 128)   bf16  VMEM  (replicated)
    # b1_ref: (1, 128)   f32   VMEM
    # w2_ref: (128, 128) bf16  VMEM  (replicated, cols 64..127 zero-padded)
    # b2_ref: (1, 128)   f32   VMEM  (zero-padded)
    # w3_ref: (1, 128)   f32   VMEM  (row vector of the 64->1 layer, zero-padded)
    # b3_ref: (1,)       f32   SMEM  (scalar)
    # o_ref : (1, TB)    f32   VMEM  (batch along lanes -> unmasked stores)

    # Layer 1: cast x to bf16 here (not in the wrapper), MXU matmul, f32 acc.
    x_bf = x_ref[...].astype(jnp.bfloat16)
    h1 = jnp.dot(x_bf, w1_ref[...], preferred_element_type=jnp.float32)
    h1 = jnp.maximum(h1 + b1_ref[...], 0.0)

    # Layer 2: bf16 MXU matmul onto 128 lane-dense columns (64 real + 64 zero).
    h2 = jnp.dot(h1.astype(jnp.bfloat16), w2_ref[...],
                 preferred_element_type=jnp.float32)
    # Dropout(0.2): identity at inference (PyTorch eval semantics).
    h2 = jnp.maximum(h2 + b2_ref[...], 0.0)

    # Layer 3 (64 -> 1): VPU broadcast-multiply + XLU lane reduction over the
    # lane-dense 128-wide tile (padded lanes multiply by zero).
    h3 = jnp.sum(h2 * w3_ref[...], axis=-1) + b3_ref[0]          # (TB,)

    o_ref[...] = h3[None, :].astype(o_ref.dtype)                  # (1, TB)


def _choose_tb(B, requested):
    """Batch tile: multiple of 128 (or full B for a single full-extent block)."""
    if B <= requested or B <= 128:
        return B                                    # single full-extent block
    tb = max(128, (min(requested, B) // 128) * 128)
    n = -(-B // tb)                                 # ceil
    if n > 1 and n % 2 == 1:
        # v7x shards the "parallel" grid axis across 2 TensorCores: prefer an
        # even block count with roughly equal block sizes (no tiny last wave).
        n += 1
        tb = max(128, ((-(-B // n) + 127) // 128) * 128)
    return tb


def _vmem_limit_bytes(tb, D, H1, H2P):
    """Scoped-VMEM budget from actual (lane/sublane-padded) double-buffered use."""
    lanes = lambda n: pl.cdiv(n, 128) * 128
    subs = lambda n, p=8: pl.cdiv(n, p) * p
    x_tiles = 2 * subs(tb) * lanes(D) * 4            # f32 x tile, double-buffered
    w1 = 2 * subs(D, 16) * lanes(H1) * 2             # bf16
    w2 = 2 * subs(H1, 16) * lanes(H2P) * 2           # bf16
    vecs = 2 * (subs(1) * lanes(H1) + 2 * subs(1) * lanes(H2P)) * 4  # b1,b2,w3
    out = 2 * subs(1) * lanes(tb) * 4                # (1, tb) f32, double-buffered
    used = x_tiles + w1 + w2 + vecs + out
    # +8 MiB headroom for compiler-internal scratch; floor 16 MiB; well under
    # v7x's 64 MiB physical VMEM, no over-reservation.
    return int(min(48 << 20, max(16 << 20, used + (8 << 20))))


def mlp_forward(x, params, *, tb=8192):
    """x: [B, D] float32 -> [B] float32 (squeezed last dim)."""
    w1, b1, w2, b2, w3, b3 = params
    B, D = x.shape
    H1 = w1.shape[1]          # 128
    H2 = w2.shape[1]          # 64
    H2P = 128                 # lane-dense padded hidden-2 width

    # Small one-time weight prep (NOT the dominant stream): bf16 MXU operands
    # and zero-padding of the 64-wide layer to 128 lanes.
    w1_bf = w1.astype(jnp.bfloat16)
    w2_p = jnp.zeros((H1, H2P), jnp.bfloat16).at[:, :H2].set(w2.astype(jnp.bfloat16))
    b1_r = b1.reshape(1, H1).astype(jnp.float32)
    b2_p = jnp.zeros((1, H2P), jnp.float32).at[:, :H2].set(b2.reshape(1, H2))
    w3_p = jnp.zeros((1, H2P), jnp.float32).at[:, :H2].set(w3.reshape(1, H2))
    b3_s = b3.reshape(1,).astype(jnp.float32)

    tb = _choose_tb(B, tb)
    grid = (pl.cdiv(B, tb),)

    out2d = pl.pallas_call(
        mlp_kernel,
        out_shape=jax.ShapeDtypeStruct((1, B), jnp.float32),
        grid_spec=pltpu.PrefetchScalarGridSpec(
            num_scalar_prefetch=0,
            grid=grid,
            in_specs=[
                pl.BlockSpec((tb, D), lambda i: (i, 0)),       # x tile over batch (f32)
                pl.BlockSpec((D, H1), lambda i: (0, 0)),       # W1 (replicated)
                pl.BlockSpec((1, H1), lambda i: (0, 0)),       # b1
                pl.BlockSpec((H1, H2P), lambda i: (0, 0)),     # W2 (padded)
                pl.BlockSpec((1, H2P), lambda i: (0, 0)),      # b2 (padded)
                pl.BlockSpec((1, H2P), lambda i: (0, 0)),      # w3 row (padded)
                pl.BlockSpec(memory_space=pltpu.MemorySpace.SMEM),  # b3 scalar
            ],
            # lane-dense output: batch axis mapped onto lanes, unmasked stores
            out_specs=pl.BlockSpec((1, tb), lambda i: (0, i)),
        ),
        compiler_params=pltpu.CompilerParams(
            dimension_semantics=("parallel",),
            vmem_limit_bytes=_vmem_limit_bytes(tb, D, H1, H2P),
        ),
    )(x, w1_bf, b1_r, w2_p, b2_p, w3_p, b3_s)

    return out2d[0]   # (B,)  == squeeze(1)


def init_params(key, input_dim):
    """Deterministic PyTorch-style init: U(-1/sqrt(fan_in), 1/sqrt(fan_in))."""
    def linear_init(k, fan_in, fan_out):
        kw, kb = jax.random.split(k)
        bound = 1.0 / (fan_in ** 0.5)
        w = jax.random.uniform(kw, (fan_in, fan_out), jnp.float32, -bound, bound)
        b = jax.random.uniform(kb, (fan_out,), jnp.float32, -bound, bound)
        return w, b

    k1, k2, k3 = jax.random.split(key, 3)
    w1, b1 = linear_init(k1, input_dim, 128)
    w2, b2 = linear_init(k2, 128, 64)
    w3, b3 = linear_init(k3, 64, 1)
    return (w1, b1, w2, b2, w3, b3)


def reference_forward(x, params, *, bf16=False):
    """Pure-JAX reference. bf16=True mirrors the kernel's operand casts."""
    w1, b1, w2, b2, w3, b3 = params
    if bf16:
        cast = lambda a: a.astype(jnp.bfloat16).astype(jnp.float32)
        x, w1, w2 = cast(x), cast(w1), cast(w2)
    h = jnp.maximum(x @ w1 + b1, 0.0)
    if bf16:
        h = h.astype(jnp.bfloat16).astype(jnp.float32)
    h = jnp.maximum(h @ w2 + b2, 0.0)       # Dropout = identity at inference
    return (h @ w3)[:, 0] + b3[0]


if __name__ == "__main__":
    key = jax.random.PRNGKey(0)
    kx, kp = jax.random.split(key)

    # B deliberately NOT a multiple of 8/128.
    B, input_dim = 200, 32
    x = jax.random.normal(kx, (B, input_dim), jnp.float32)
    params = init_params(kp, input_dim)

    ref_bf16 = reference_forward(x, params, bf16=True)
    ref_f32 = reference_forward(x, params, bf16=False)

    # 1) Default tile: single full-extent block (B < tb).
    out = jax.block_until_ready(mlp_forward(x, params))
    assert out.shape == (B,), out.shape
    assert jnp.allclose(out, ref_bf16, atol=2e-3, rtol=2e-3), (
        float(jnp.max(jnp.abs(out - ref_bf16))))
    assert jnp.allclose(out, ref_f32, atol=5e-2, rtol=5e-2), (
        float(jnp.max(jnp.abs(out - ref_f32))))

    # 2) Forced small tile: multi-block grid with a ragged tail (B % tb != 0),
    #    exercising the padded tail-block / masked-store path.
    out_tiled = jax.block_until_ready(mlp_forward(x, params, tb=128))
    assert out_tiled.shape == (B,), out_tiled.shape
    assert jnp.allclose(out_tiled, ref_bf16, atol=2e-3, rtol=2e-3), (
        float(jnp.max(jnp.abs(out_tiled - ref_bf16))))

    print("KERNEL_OK")
</pallas_src>

<mosaic_0001>
module attributes {stable_mosaic.version = 11 : i64} {
  func.func @mlp_kernel(%arg0: i32, %arg1: memref<200x32xf32, #tpu.memory_space<vmem>>, %arg2: memref<32x128xbf16, #tpu.memory_space<vmem>>, %arg3: memref<1x128xf32, #tpu.memory_space<vmem>>, %arg4: memref<128x128xbf16, #tpu.memory_space<vmem>>, %arg5: memref<1x128xf32, #tpu.memory_space<vmem>>, %arg6: memref<1x128xf32, #tpu.memory_space<vmem>>, %arg7: memref<1xf32, #tpu.memory_space<smem>>, %arg8: memref<1x200xf32, #tpu.memory_space<vmem>>) attributes {dimension_semantics = [#tpu.dimension_semantics<parallel>], iteration_bounds = array<i64: 1>, scalar_prefetch = 0 : i64, scratch_operands = 0 : i64, tpu.core_type = #tpu.core_type<tc>, window_params = [{transform_indices = @transform_0, window_bounds = array<i64: 200, 32>}, {pipeline_mode = #tpu.pipeline_mode<synchronous>, transform_indices = @transform_1, window_bounds = array<i64: 32, 128>}, {pipeline_mode = #tpu.pipeline_mode<synchronous>, transform_indices = @transform_2, window_bounds = array<i64: 1, 128>}, {pipeline_mode = #tpu.pipeline_mode<synchronous>, transform_indices = @transform_3, window_bounds = array<i64: 128, 128>}, {pipeline_mode = #tpu.pipeline_mode<synchronous>, transform_indices = @transform_4, window_bounds = array<i64: 1, 128>}, {pipeline_mode = #tpu.pipeline_mode<synchronous>, transform_indices = @transform_5, window_bounds = array<i64: 1, 128>}, {transform_indices = @transform_6, window_bounds = array<i64: 1>}, {transform_indices = @transform_7, window_bounds = array<i64: 1, 200>}]} {
    %c0 = arith.constant 0 : index
    %c0_0 = arith.constant 0 : index
    %0 = vector.load %arg1[%c0, %c0_0] : memref<200x32xf32, #tpu.memory_space<vmem>>, vector<200x32xf32>
    %1 = arith.truncf %0 : vector<200x32xf32> to vector<200x32xbf16>
    %c0_1 = arith.constant 0 : index
    %c0_2 = arith.constant 0 : index
    %2 = vector.load %arg2[%c0_1, %c0_2] : memref<32x128xbf16, #tpu.memory_space<vmem>>, vector<32x128xbf16>
    %cst = arith.constant dense<0.000000e+00> : vector<200x128xf32>
    %3 = tpu.matmul %1, %2, %cst {dimension_numbers = #tpu.dot_dimension_numbers<[1], [0], [0], [1], [0, 0, 1, 1], [], []>} : vector<200x32xbf16>, vector<32x128xbf16>, vector<200x128xf32> -> vector<200x128xf32>
    %c0_3 = arith.constant 0 : index
    %c0_4 = arith.constant 0 : index
    %4 = vector.load %arg3[%c0_3, %c0_4] : memref<1x128xf32, #tpu.memory_space<vmem>>, vector<1x128xf32>
    %5 = vector.broadcast %4 : vector<1x128xf32> to vector<200x128xf32>
    %6 = arith.addf %3, %5 : vector<200x128xf32>
    %cst_5 = arith.constant 0.000000e+00 : f32
    %7 = vector.broadcast %cst_5 : f32 to vector<200x128xf32>
    %8 = arith.maximumf %6, %7 : vector<200x128xf32>
    %9 = arith.truncf %8 : vector<200x128xf32> to vector<200x128xbf16>
    %c0_6 = arith.constant 0 : index
    %c0_7 = arith.constant 0 : index
    %10 = vector.load %arg4[%c0_6, %c0_7] : memref<128x128xbf16, #tpu.memory_space<vmem>>, vector<128x128xbf16>
    %cst_8 = arith.constant dense<0.000000e+00> : vector<200x128xf32>
    %11 = tpu.matmul %9, %10, %cst_8 {dimension_numbers = #tpu.dot_dimension_numbers<[1], [0], [0], [1], [0, 0, 1, 1], [], []>} : vector<200x128xbf16>, vector<128x128xbf16>, vector<200x128xf32> -> vector<200x128xf32>
    %c0_9 = arith.constant 0 : index
    %c0_10 = arith.constant 0 : index
    %12 = vector.load %arg5[%c0_9, %c0_10] : memref<1x128xf32, #tpu.memory_space<vmem>>, vector<1x128xf32>
    %13 = vector.broadcast %12 : vector<1x128xf32> to vector<200x128xf32>
    %14 = arith.addf %11, %13 : vector<200x128xf32>
    %cst_11 = arith.constant 0.000000e+00 : f32
    %15 = vector.broadcast %cst_11 : f32 to vector<200x128xf32>
    %16 = arith.maximumf %14, %15 : vector<200x128xf32>
    %c0_12 = arith.constant 0 : index
    %c0_13 = arith.constant 0 : index
    %17 = vector.load %arg6[%c0_12, %c0_13] : memref<1x128xf32, #tpu.memory_space<vmem>>, vector<1x128xf32>
    %18 = vector.broadcast %17 : vector<1x128xf32> to vector<200x128xf32>
    %19 = arith.mulf %16, %18 : vector<200x128xf32>
    %cst_14 = arith.constant dense<0.000000e+00> : vector<200xf32>
    %20 = vector.multi_reduction <add>, %19, %cst_14 [1] : vector<200x128xf32> to vector<200xf32>
    %c0_15 = arith.constant 0 : index
    %21 = memref.load %arg7[%c0_15] : memref<1xf32, #tpu.memory_space<smem>>
    %22 = vector.broadcast %21 : f32 to vector<200xf32>
    %23 = arith.addf %20, %22 : vector<200xf32>
    %24 = vector.shape_cast %23 : vector<200xf32> to vector<1x200xf32>
    %c0_16 = arith.constant 0 : index
    %c0_17 = arith.constant 0 : index
    %25 = vector.load %arg8[%c0_16, %c0_17] : memref<1x200xf32, #tpu.memory_space<vmem>>, vector<1x200xf32>
    tpu.vector_store %arg8[%c0_16, %c0_17], %24 {strides = array<i32>} : memref<1x200xf32, #tpu.memory_space<vmem>>, vector<1x200xf32>,
    return
  }
  func.func @transform_0(%arg0: i32) -> (i32, i32) {
    %c0_i32 = arith.constant 0 : i32
    %c0_i32_0 = arith.constant 0 : i32
    return %arg0, %c0_i32 : i32, i32
  }
  func.func @transform_1(%arg0: i32) -> (i32, i32) {
    %c0_i32 = arith.constant 0 : i32
    %c0_i32_0 = arith.constant 0 : i32
    %c0_i32_1 = arith.constant 0 : i32
    return %c0_i32, %c0_i32_0 : i32, i32
  }
  func.func @transform_2(%arg0: i32) -> (i32, i32) {
    %c0_i32 = arith.constant 0 : i32
    %c0_i32_0 = arith.constant 0 : i32
    %c0_i32_1 = arith.constant 0 : i32
    return %c0_i32, %c0_i32_0 : i32, i32
  }
  func.func @transform_3(%arg0: i32) -> (i32, i32) {
    %c0_i32 = arith.constant 0 : i32
    %c0_i32_0 = arith.constant 0 : i32
    %c0_i32_1 = arith.constant 0 : i32
    return %c0_i32, %c0_i32_0 : i32, i32
  }
  func.func @transform_4(%arg0: i32) -> (i32, i32) {
    %c0_i32 = arith.constant 0 : i32
    %c0_i32_0 = arith.constant 0 : i32
    %c0_i32_1 = arith.constant 0 : i32
    return %c0_i32, %c0_i32_0 : i32, i32
  }
  func.func @transform_5(%arg0: i32) -> (i32, i32) {
    %c0_i32 = arith.constant 0 : i32
    %c0_i32_0 = arith.constant 0 : i32
    %c0_i32_1 = arith.constant 0 : i32
    return %c0_i32, %c0_i32_0 : i32, i32
  }
  func.func @transform_6(%arg0: i32) -> i32 {
    %c0_i32 = arith.constant 0 : i32
    %c0_i32_0 = arith.constant 0 : i32
    return %c0_i32 : i32
  }
  func.func @transform_7(%arg0: i32) -> (i32, i32) {
    %c0_i32 = arith.constant 0 : i32
    %c0_i32_0 = arith.constant 0 : i32
    return %c0_i32, %arg0 : i32, i32
  }
}

</mosaic_0001>

<llo_original>
// kernel: tpu_custom_call.1
$region0: #{tpu_custom_call.1}
  #allocation0 [shape = 'u32[]', space=smem, size = 0x4, offset = 0x4, fixed_abs, tag = 'smem constant byte address 0x4 - core index']
  #allocation1 [shape = 'u32[144,128]{1,0:T(1,128)}', space=vmem, size = 0x12000, scoped, tag = 'internal scratch']
  #allocation2 [shape = 'f32[1]{0:T(128)S(6)}', space=smem, size = 0x200, scoped, tag = 'scoped memory for tpu_custom_call.1']
  %s0 = inlined_call_operand.vmem [shape: f32[200,32], index: 0, kind: input, shape index: {}]
  %s1 = inlined_call_operand.vmem [shape: bf16[32,128], index: 1, kind: input, shape index: {}]
  %s2 = inlined_call_operand.vmem [shape: f32[1,128], index: 2, kind: input, shape index: {}]
  %s3 = inlined_call_operand.vmem [shape: bf16[128,128], index: 3, kind: input, shape index: {}]
  %s4 = inlined_call_operand.vmem [shape: f32[1,128], index: 4, kind: input, shape index: {}]
  %s5 = inlined_call_operand.vmem [shape: f32[1,128], index: 5, kind: input, shape index: {}]
  %s6 = inlined_call_operand.<no memory space> [shape: f32[1], index: 6, kind: input, shape index: {}]
  %s7 = inlined_call_operand.hbm [shape: f32[1,200], index: 7, kind: output, shape index: {}]
  %s8 = sld [smem:[#allocation0]]
  $region38: #{tpu_custom_call.1} parent=0
    _
  %s10 = ssub.s32 1, %s8
  %s11 = scalar_select 0, %s10, %s8
  %12 = sst [smem:[#allocation2]] %s6
  $region1: #{tpu_custom_call.1} parent=0
    #allocation3 [shape = 'u8[1024]{0}', space=vmem, size = 0x400, scoped, tag = 'output window, operand 0, single buffered']
    #allocation4 [shape = 's32[1]{0}', space=sflag, size = 0x4, scoped, tag = 'scoped memory for tpu_custom_call.1']
    %13 = vsyncpa [#allocation4], 0
    // Predicated region
    $region2: #{tpu_custom_call.1} parent=1 // pred_check
      _
    $region3: #{tpu_custom_call.1} parent=1 // pred_check_branch
      %15 = sbr.rel (0) target = $region5
    $region4: #{tpu_custom_call.1} parent=1 // pred_region
      _
    $region5: #{tpu_custom_call.1} parent=1 // pred_fallthru
      _
    // Predicated region
    $region6: #{tpu_custom_call.1} parent=1 // pred_check
      _
    $region7: #{tpu_custom_call.1} parent=1 // pred_check_branch
      %17 = sbr.rel (0) target = $region9
    $region8: #{tpu_custom_call.1} parent=1 // pred_region
      _
    $region9: #{tpu_custom_call.1} parent=1 // pred_fallthru
      _
    // Predicated region
    $region10: #{tpu_custom_call.1} parent=1 // pred_check
      _
    $region11: #{tpu_custom_call.1} parent=1 // pred_check_branch
      %19 = sbr.rel (0) target = $region13
    $region12: #{tpu_custom_call.1} parent=1 // pred_region
      _
    $region13: #{tpu_custom_call.1} parent=1 // pred_fallthru
      _
    // Predicated region
    $region14: #{tpu_custom_call.1} parent=1 // pred_check
      _
    $region15: #{tpu_custom_call.1} parent=1 // pred_check_branch
      %21 = sbr.rel (0) target = $region17
    $region16: #{tpu_custom_call.1} parent=1 // pred_region
      _
    $region17: #{tpu_custom_call.1} parent=1 // pred_fallthru
      _
    // Predicated region
    $region18: #{tpu_custom_call.1} parent=1 // pred_check
      _
    $region19: #{tpu_custom_call.1} parent=1 // pred_check_branch
      %23 = sbr.rel (0) target = $region21
    $region20: #{tpu_custom_call.1} parent=1 // pred_region
      _
    $region21: #{tpu_custom_call.1} parent=1 // pred_fallthru
      _
    // Predicated region
    $region22: #{tpu_custom_call.1} parent=1 // pred_check
      _
    $region23: #{tpu_custom_call.1} parent=1 // pred_check_branch
      %25 = sbr.rel (0) target = $region25
    $region24: #{tpu_custom_call.1} parent=1 // pred_region
      _
    $region25: #{tpu_custom_call.1} parent=1 // pred_fallthru
      _
    // Predicated region
    $region26: #{tpu_custom_call.1} parent=1 // pred_check
      _
    $region27: #{tpu_custom_call.1} parent=1 // pred_check_branch
      %27 = sbr.rel (0) target = $region29
    $region28: #{tpu_custom_call.1} parent=1 // pred_region
      _
    $region29: #{tpu_custom_call.1} parent=1 // pred_fallthru
      _
    %v29 = vld [vmem:[%s0] sm:$0xff]
    %v30 = vld [vmem:[%s0 + $0x8] sm:$0xff]
    %v31 = vld [vmem:[%s0 + $0x10] sm:$0xff]
    %v32 = vld [vmem:[%s0 + $0x18] sm:$0xff]
    %v33 = vld [vmem:[%s0 + $0x20] sm:$0xff]
    %v34 = vld [vmem:[%s0 + $0x28] sm:$0xff]
    %v35 = vld [vmem:[%s0 + $0x30] sm:$0xff]
    %v36 = vld [vmem:[%s0 + $0x38] sm:$0xff]
    %v37 = vld [vmem:[%s0 + $0x40] sm:$0xff]
    %v38 = vld [vmem:[%s0 + $0x48] sm:$0xff]
    %v39 = vld [vmem:[%s0 + $0x50] sm:$0xff]
    %v40 = vld [vmem:[%s0 + $0x58] sm:$0xff]
    %v41 = vld [vmem:[%s0 + $0x60] sm:$0xff]
    %v42 = vld [vmem:[%s0 + $0x68] sm:$0xff]
    %v43 = vld [vmem:[%s0 + $0x70] sm:$0xff]
    %v44 = vld [vmem:[%s0 + $0x78] sm:$0xff]
    %v45 = vld [vmem:[%s0 + $0x80] sm:$0xff]
    %v46 = vld [vmem:[%s0 + $0x88] sm:$0xff]
    %v47 = vld [vmem:[%s0 + $0x90] sm:$0xff]
    %v48 = vld [vmem:[%s0 + $0x98] sm:$0xff]
    %v49 = vld [vmem:[%s0 + $0xa0] sm:$0xff]
    %v50 = vld [vmem:[%s0 + $0xa8] sm:$0xff]
    %v51 = vld [vmem:[%s0 + $0xb0] sm:$0xff]
    %v52 = vld [vmem:[%s0 + $0xb8] sm:$0xff]
    %v53 = vld [vmem:[%s0 + $0xc0] sm:$0xff]
    %v54 = vpack.c.bf16 %v30, %v29
    %v55 = vpack.c.bf16 %v32, %v31
    %v56 = vpack.c.bf16 %v34, %v33
    %v57 = vpack.c.bf16 %v36, %v35
    %v58 = vpack.c.bf16 %v38, %v37
    %v59 = vpack.c.bf16 %v40, %v39
    %v60 = vpack.c.bf16 %v42, %v41
    %v61 = vpack.c.bf16 %v44, %v43
    %v62 = vpack.c.bf16 %v46, %v45
    %v63 = vpack.c.bf16 %v48, %v47
    %v64 = vpack.c.bf16 %v50, %v49
    %v65 = vpack.c.bf16 %v52, %v51
    %v66 = vpack.c.bf16 %v53, %v53
    %v67 = vld [vmem:[%s1] sm:$0xf]
    %v68 = vld [vmem:[%s1 + $0x4] sm:$0xf]
    %v69 = vld [vmem:[%s1 + $0x8] sm:$0xf]
    %v70 = vld [vmem:[%s1 + $0xc] sm:$0xf]
    %v71 = vld [vmem:[%s2] sm:$0x1]
    %v73 = vlaneseq
    %v74 = vshrl.u32 %v73, 7
    %v75 = vsub.s32 0, %v74
    %v76 = vrot.slane %v71, %v75
    %v82 = vunpack.c.l.b16 %v67
    %v83 = vunpack.c.l.b16 %v68
    %v84 = vunpack.c.l.b16 %v69
    %v85 = vunpack.c.l.b16 %v70
    %v86 = vpack.c.b16 %v83, %v82
    %v87 = vpack.c.b16 %v85, %v84
    %vm90 = vcmask 261120
    %v92 = vsel %vm90, %v54, 0
    %v95 = vsel %vm90, %v55, 0
    %v98 = vsel %vm90, %v56, 0
    %v101 = vsel %vm90, %v57, 0
    %v104 = vsel %vm90, %v58, 0
    %v107 = vsel %vm90, %v59, 0
    %v110 = vsel %vm90, %v60, 0
    %v113 = vsel %vm90, %v61, 0
    %v116 = vsel %vm90, %v62, 0
    %v119 = vsel %vm90, %v63, 0
    %v122 = vsel %vm90, %v64, 0
    %v125 = vsel %vm90, %v65, 0
    %v128 = vsel %vm90, %v66, 0
    %130 = vmatprep.subr.bf16.mxu0 0
    %131 = vmatpush1.bf16.msra.mxu0 %v86
    %132 = vmatprep.subr.bf16.mxu0 0
    %133 = vmatpush1.bf16.msra.mxu0 %v87
    %134 = vmatprep.subr.bf16.mxu0 0
    %135 = vmatpush1.bf16.msra.mxu0 0
    %136 = vmatprep.subr.bf16.mxu0 0
    %137 = vmatpush1.bf16.msra.mxu0 0
    %138 = vmatprep.subr.bf16.mxu0 0
    %139 = vmatpush1.bf16.msra.mxu0 0
    %140 = vmatprep.subr.bf16.mxu0 0
    %141 = vmatpush1.bf16.msra.mxu0 0
    %142 = vmatprep.subr.bf16.mxu0 0
    %143 = vmatpush1.bf16.msra.mxu0 0
    %144 = vmatprep.subr.bf16.mxu0 0
    %145 = vmatpush1.bf16.msra.mxu0 0
    %146 = vmatprep.subr.bf16.mxu0 0
    %147 = vmatpush1.bf16.msra.mxu0 0
    %148 = vmatprep.subr.bf16.mxu0 0
    %149 = vmatpush1.bf16.msra.mxu0 0
    %150 = vmatprep.subr.bf16.mxu0 0
    %151 = vmatpush1.bf16.msra.mxu0 0
    %152 = vmatprep.subr.bf16.mxu0 0
    %153 = vmatpush1.bf16.msra.mxu0 0
    %154 = vmatprep.subr.bf16.mxu0 0
    %155 = vmatpush1.bf16.msra.mxu0 0
    %156 = vmatprep.subr.bf16.mxu0 0
    %157 = vmatpush1.bf16.msra.mxu0 0
    %158 = vmatprep.subr.bf16.mxu0 0
    %159 = vmatpush1.bf16.msra.mxu0 0
    %160 = vmatprep.subr.bf16.mxu0 0
    %161 = vmatpush1.bf16.msra.mxu0 0
    %162 = vmatprep.mubr.bf16.mxu0 0
    %163 = vmatmul.mubr.bf16.gmra.mrb[0].mxu0 %v92
    %v164 = vpop.f32.mrb[0].mxu0
    %v165 = vadd.f32 %v76, %v164
    %v166 = vpop.f32.mrb[0].mxu0
    %v167 = vpop.f32.mrb[0].mxu0
    %v168 = vadd.f32 %v76, %v167
    %v169 = vpop.f32.mrb[0].mxu0
    %170 = vmatprep.mubr.bf16.mxu0 0
    %171 = vmatmul.mubr.bf16.gmra.mrb[0].mxu0 %v95
    %v172 = vpop.f32.mrb[0].mxu0
    %v173 = vadd.f32 %v76, %v172
    %v174 = vpop.f32.mrb[0].mxu0
    %v175 = vpop.f32.mrb[0].mxu0
    %v176 = vadd.f32 %v76, %v175
    %v177 = vpop.f32.mrb[0].mxu0
    %178 = vmatprep.mubr.bf16.mxu0 0
    %179 = vmatmul.mubr.bf16.gmra.mrb[0].mxu0 %v98
    %v180 = vpop.f32.mrb[0].mxu0
    %v181 = vadd.f32 %v76, %v180
    %v182 = vpop.f32.mrb[0].mxu0
    %v183 = vpop.f32.mrb[0].mxu0
    %v184 = vadd.f32 %v76, %v183
    %v185 = vpop.f32.mrb[0].mxu0
    %186 = vmatprep.mubr.bf16.mxu0 0
    %187 = vmatmul.mubr.bf16.gmra.mrb[0].mxu0 %v101
    %v188 = vpop.f32.mrb[0].mxu0
    %v189 = vadd.f32 %v76, %v188
    %v190 = vpop.f32.mrb[0].mxu0
    %v191 = vpop.f32.mrb[0].mxu0
    %v192 = vadd.f32 %v76, %v191
    %v193 = vpop.f32.mrb[0].mxu0
    %194 = vmatprep.mubr.bf16.mxu0 0
    %195 = vmatmul.mubr.bf16.gmra.mrb[0].mxu0 %v104
    %v196 = vpop.f32.mrb[0].mxu0
    %v197 = vadd.f32 %v76, %v196
    %v198 = vpop.f32.mrb[0].mxu0
    %v199 = vpop.f32.mrb[0].mxu0
    %v200 = vadd.f32 %v76, %v199
    %v201 = vpop.f32.mrb[0].mxu0
    %202 = vmatprep.mubr.bf16.mxu0 0
    %203 = vmatmul.mubr.bf16.gmra.mrb[0].mxu0 %v107
    %v204 = vpop.f32.mrb[0].mxu0
    %v205 = vadd.f32 %v76, %v204
    %v206 = vpop.f32.mrb[0].mxu0
    %v207 = vpop.f32.mrb[0].mxu0
    %v208 = vadd.f32 %v76, %v207
    %v209 = vpop.f32.mrb[0].mxu0
    %210 = vmatprep.mubr.bf16.mxu0 0
    %211 = vmatmul.mubr.bf16.gmra.mrb[0].mxu0 %v110
    %v212 = vpop.f32.mrb[0].mxu0
    %v213 = vadd.f32 %v76, %v212
    %v214 = vpop.f32.mrb[0].mxu0
    %v215 = vpop.f32.mrb[0].mxu0
    %v216 = vadd.f32 %v76, %v215
    %v217 = vpop.f32.mrb[0].mxu0
    %218 = vmatprep.mubr.bf16.mxu0 0
    %219 = vmatmul.mubr.bf16.gmra.mrb[0].mxu0 %v113
    %v220 = vpop.f32.mrb[0].mxu0
    %v221 = vadd.f32 %v76, %v220
    %v222 = vpop.f32.mrb[0].mxu0
    %v223 = vpop.f32.mrb[0].mxu0
    %v224 = vadd.f32 %v76, %v223
    %v225 = vpop.f32.mrb[0].mxu0
    %226 = vmatprep.mubr.bf16.mxu0 0
    %227 = vmatmul.mubr.bf16.gmra.mrb[0].mxu0 %v116
    %v228 = vpop.f32.mrb[0].mxu0
    %v229 = vadd.f32 %v76, %v228
    %v230 = vpop.f32.mrb[0].mxu0
    %v231 = vpop.f32.mrb[0].mxu0
    %v232 = vadd.f32 %v76, %v231
    %v233 = vpop.f32.mrb[0].mxu0
    %234 = vmatprep.mubr.bf16.mxu0 0
    %235 = vmatmul.mubr.bf16.gmra.mrb[0].mxu0 %v119
    %v236 = vpop.f32.mrb[0].mxu0
    %v237 = vadd.f32 %v76, %v236
    %v238 = vpop.f32.mrb[0].mxu0
    %v239 = vpop.f32.mrb[0].mxu0
    %v240 = vadd.f32 %v76, %v239
    %v241 = vpop.f32.mrb[0].mxu0
    %242 = vmatprep.mubr.bf16.mxu0 0
    %243 = vmatmul.mubr.bf16.gmra.mrb[0].mxu0 %v122
    %v244 = vpop.f32.mrb[0].mxu0
    %v245 = vadd.f32 %v76, %v244
    %v246 = vpop.f32.mrb[0].mxu0
    %v247 = vpop.f32.mrb[0].mxu0
    %v248 = vadd.f32 %v76, %v247
    %v249 = vpop.f32.mrb[0].mxu0
    %250 = vmatprep.mubr.bf16.mxu0 0
    %251 = vmatmul.mubr.bf16.gmra.mrb[0].mxu0 %v125
    %v252 = vpop.f32.mrb[0].mxu0
    %v253 = vadd.f32 %v76, %v252
    %v254 = vpop.f32.mrb[0].mxu0
    %v255 = vpop.f32.mrb[0].mxu0
    %v256 = vadd.f32 %v76, %v255
    %v257 = vpop.f32.mrb[0].mxu0
    %258 = vmatprep.mubr.bf16.mxu0 0
    %259 = vmatmul.mubr.bf16.gmra.mrb[0].mxu0 %v128
    %v260 = vpop.f32.mrb[0].mxu0
    %v261 = vadd.f32 %v76, %v260
    %v262 = vpop.f32.mrb[0].mxu0
    %v263 = vpop.f32.mrb[0].mxu0
    %v264 = vpop.f32.mrb[0].mxu0
    %265 = vdwg.mxu0
    %v266 = vmax.f32 %v165, 0.0
    %v267 = vmax.f32 %v168, 0.0
    %v268 = vmax.f32 %v173, 0.0
    %v269 = vmax.f32 %v176, 0.0
    %v270 = vmax.f32 %v181, 0.0
    %v271 = vmax.f32 %v184, 0.0
    %v272 = vmax.f32 %v189, 0.0
    %v273 = vmax.f32 %v192, 0.0
    %v274 = vmax.f32 %v197, 0.0
    %v275 = vmax.f32 %v200, 0.0
    %v276 = vmax.f32 %v205, 0.0
    %v277 = vmax.f32 %v208, 0.0
    %v278 = vmax.f32 %v213, 0.0
    %v279 = vmax.f32 %v216, 0.0
    %v280 = vmax.f32 %v221, 0.0
    %v281 = vmax.f32 %v224, 0.0
    %v282 = vmax.f32 %v229, 0.0
    %v283 = vmax.f32 %v232, 0.0
    %v284 = vmax.f32 %v237, 0.0
    %v285 = vmax.f32 %v240, 0.0
    %v286 = vmax.f32 %v245, 0.0
    %v287 = vmax.f32 %v248, 0.0
    %v288 = vmax.f32 %v253, 0.0
    %v289 = vmax.f32 %v256, 0.0
    %v290 = vmax.f32 %v261, 0.0
    %v291 = vpack.c.bf16 %v267, %v266
    %v292 = vpack.c.bf16 %v269, %v268
    %v293 = vpack.c.bf16 %v271, %v270
    %v294 = vpack.c.bf16 %v273, %v272
    %v295 = vpack.c.bf16 %v275, %v274
    %v296 = vpack.c.bf16 %v277, %v276
    %v297 = vpack.c.bf16 %v279, %v278
    %v298 = vpack.c.bf16 %v281, %v280
    %v299 = vpack.c.bf16 %v283, %v282
    %v300 = vpack.c.bf16 %v285, %v284
    %v301 = vpack.c.bf16 %v287, %v286
    %v302 = vpack.c.bf16 %v289, %v288
    %v303 = vpack.c.bf16 %v290, %v290
    %v304 = vld [vmem:[%s3] sm:$0xf]
    %v305 = vld [vmem:[%s3 + $0x4] sm:$0xf]
    %v306 = vld [vmem:[%s3 + $0x8] sm:$0xf]
    %v307 = vld [vmem:[%s3 + $0xc] sm:$0xf]
    %v308 = vld [vmem:[%s3 + $0x10] sm:$0xf]
    %v309 = vld [vmem:[%s3 + $0x14] sm:$0xf]
    %v310 = vld [vmem:[%s3 + $0x18] sm:$0xf]
    %v311 = vld [vmem:[%s3 + $0x1c] sm:$0xf]
    %v312 = vld [vmem:[%s3 + $0x20] sm:$0xf]
    %v313 = vld [vmem:[%s3 + $0x24] sm:$0xf]
    %v314 = vld [vmem:[%s3 + $0x28] sm:$0xf]
    %v315 = vld [vmem:[%s3 + $0x2c] sm:$0xf]
    %v316 = vld [vmem:[%s3 + $0x30] sm:$0xf]
    %v317 = vld [vmem:[%s3 + $0x34] sm:$0xf]
    %v318 = vld [vmem:[%s3 + $0x38] sm:$0xf]
    %v319 = vld [vmem:[%s3 + $0x3c] sm:$0xf]
    %v320 = vld [vmem:[%s4] sm:$0x1]
    %v322 = vlaneseq
    %v323 = vshrl.u32 %v322, 7
    %v324 = vsub.s32 0, %v323
    %v325 = vrot.slane %v320, %v324
    %v343 = vunpack.c.l.b16 %v304
    %v344 = vunpack.c.l.b16 %v305
    %v345 = vunpack.c.l.b16 %v306
    %v346 = vunpack.c.l.b16 %v307
    %v347 = vunpack.c.l.b16 %v308
    %v348 = vunpack.c.l.b16 %v309
    %v349 = vunpack.c.l.b16 %v310
    %v350 = vunpack.c.l.b16 %v311
    %v351 = vunpack.c.l.b16 %v312
    %v352 = vunpack.c.l.b16 %v313
    %v353 = vunpack.c.l.b16 %v314
    %v354 = vunpack.c.l.b16 %v315
    %v355 = vunpack.c.l.b16 %v316
    %v356 = vunpack.c.l.b16 %v317
    %v357 = vunpack.c.l.b16 %v318
    %v358 = vunpack.c.l.b16 %v319
    %v359 = vpack.c.b16 %v344, %v343
    %v360 = vpack.c.b16 %v346, %v345
    %v361 = vpack.c.b16 %v348, %v347
    %v362 = vpack.c.b16 %v350, %v349
    %v363 = vpack.c.b16 %v352, %v351
    %v364 = vpack.c.b16 %v354, %v353
    %v365 = vpack.c.b16 %v356, %v355
    %v366 = vpack.c.b16 %v358, %v357
    %375 = vmatprep.subr.bf16.mxu0 0
    %376 = vmatpush1.bf16.msra.mxu0 %v359
    %377 = vmatprep.subr.bf16.mxu0 0
    %378 = vmatpush1.bf16.msra.mxu0 %v360
    %379 = vmatprep.subr.bf16.mxu0 0
    %380 = vmatpush1.bf16.msra.mxu0 %v361
    %381 = vmatprep.subr.bf16.mxu0 0
    %382 = vmatpush1.bf16.msra.mxu0 %v362
    %383 = vmatprep.subr.bf16.mxu0 0
    %384 = vmatpush1.bf16.msra.mxu0 %v363
    %385 = vmatprep.subr.bf16.mxu0 0
    %386 = vmatpush1.bf16.msra.mxu0 %v364
    %387 = vmatprep.subr.bf16.mxu0 0
    %388 = vmatpush1.bf16.msra.mxu0 %v365
    %389 = vmatprep.subr.bf16.mxu0 0
    %390 = vmatpush1.bf16.msra.mxu0 %v366
    %391 = vmatprep.subr.bf16.mxu0 0
    %392 = vmatpush1.bf16.msra.mxu0 0
    %393 = vmatprep.subr.bf16.mxu0 0
    %394 = vmatpush1.bf16.msra.mxu0 0
    %395 = vmatprep.subr.bf16.mxu0 0
    %396 = vmatpush1.bf16.msra.mxu0 0
    %397 = vmatprep.subr.bf16.mxu0 0
    %398 = vmatpush1.bf16.msra.mxu0 0
    %399 = vmatprep.subr.bf16.mxu0 0
    %400 = vmatpush1.bf16.msra.mxu0 0
    %401 = vmatprep.subr.bf16.mxu0 0
    %402 = vmatpush1.bf16.msra.mxu0 0
    %403 = vmatprep.subr.bf16.mxu0 0
    %404 = vmatpush1.bf16.msra.mxu0 0
    %405 = vmatprep.subr.bf16.mxu0 0
    %406 = vmatpush1.bf16.msra.mxu0 0
    %407 = vmatprep.mubr.bf16.mxu0 0
    %408 = vmatmul.mubr.bf16.gmra.mrb[0].mxu0 %v291
    %v409 = vpop.f32.mrb[0].mxu0
    %v410 = vadd.f32 %v325, %v409
    %v411 = vpop.f32.mrb[0].mxu0
    %v412 = vpop.f32.mrb[0].mxu0
    %v413 = vadd.f32 %v325, %v412
    %v414 = vpop.f32.mrb[0].mxu0
    %415 = vmatprep.mubr.bf16.mxu0 0
    %416 = vmatmul.mubr.bf16.gmra.mrb[0].mxu0 %v292
    %v417 = vpop.f32.mrb[0].mxu0
    %v418 = vadd.f32 %v325, %v417
    %v419 = vpop.f32.mrb[0].mxu0
    %v420 = vpop.f32.mrb[0].mxu0
    %v421 = vadd.f32 %v325, %v420
    %v422 = vpop.f32.mrb[0].mxu0
    %423 = vmatprep.mubr.bf16.mxu0 0
    %424 = vmatmul.mubr.bf16.gmra.mrb[0].mxu0 %v293
    %v425 = vpop.f32.mrb[0].mxu0
    %v426 = vadd.f32 %v325, %v425
    %v427 = vpop.f32.mrb[0].mxu0
    %v428 = vpop.f32.mrb[0].mxu0
    %v429 = vadd.f32 %v325, %v428
    %v430 = vpop.f32.mrb[0].mxu0
    %431 = vmatprep.mubr.bf16.mxu0 0
    %432 = vmatmul.mubr.bf16.gmra.mrb[0].mxu0 %v294
    %v433 = vpop.f32.mrb[0].mxu0
    %v434 = vadd.f32 %v325, %v433
    %v435 = vpop.f32.mrb[0].mxu0
    %v436 = vpop.f32.mrb[0].mxu0
    %v437 = vadd.f32 %v325, %v436
    %v438 = vpop.f32.mrb[0].mxu0
    %439 = vmatprep.mubr.bf16.mxu0 0
    %440 = vmatmul.mubr.bf16.gmra.mrb[0].mxu0 %v295
    %v441 = vpop.f32.mrb[0].mxu0
    %v442 = vadd.f32 %v325, %v441
    %v443 = vpop.f32.mrb[0].mxu0
    %v444 = vpop.f32.mrb[0].mxu0
    %v445 = vadd.f32 %v325, %v444
    %v446 = vpop.f32.mrb[0].mxu0
    %447 = vmatprep.mubr.bf16.mxu0 0
    %448 = vmatmul.mubr.bf16.gmra.mrb[0].mxu0 %v296
    %v449 = vpop.f32.mrb[0].mxu0
    %v450 = vadd.f32 %v325, %v449
    %v451 = vpop.f32.mrb[0].mxu0
    %v452 = vpop.f32.mrb[0].mxu0
    %v453 = vadd.f32 %v325, %v452
    %v454 = vpop.f32.mrb[0].mxu0
    %455 = vmatprep.mubr.bf16.mxu0 0
    %456 = vmatmul.mubr.bf16.gmra.mrb[0].mxu0 %v297
    %v457 = vpop.f32.mrb[0].mxu0
    %v458 = vadd.f32 %v325, %v457
    %v459 = vpop.f32.mrb[0].mxu0
    %v460 = vpop.f32.mrb[0].mxu0
    %v461 = vadd.f32 %v325, %v460
    %v462 = vpop.f32.mrb[0].mxu0
    %463 = vmatprep.mubr.bf16.mxu0 0
    %464 = vmatmul.mubr.bf16.gmra.mrb[0].mxu0 %v298
    %v465 = vpop.f32.mrb[0].mxu0
    %v466 = vadd.f32 %v325, %v465
    %v467 = vpop.f32.mrb[0].mxu0
    %v468 = vpop.f32.mrb[0].mxu0
    %v469 = vadd.f32 %v325, %v468
    %v470 = vpop.f32.mrb[0].mxu0
    %471 = vmatprep.mubr.bf16.mxu0 0
    %472 = vmatmul.mubr.bf16.gmra.mrb[0].mxu0 %v299
    %v473 = vpop.f32.mrb[0].mxu0
    %v474 = vadd.f32 %v325, %v473
    %v475 = vpop.f32.mrb[0].mxu0
    %v476 = vpop.f32.mrb[0].mxu0
    %v477 = vadd.f32 %v325, %v476
    %v478 = vpop.f32.mrb[0].mxu0
    %479 = vmatprep.mubr.bf16.mxu0 0
    %480 = vmatmul.mubr.bf16.gmra.mrb[0].mxu0 %v300
    %v481 = vpop.f32.mrb[0].mxu0
    %v482 = vadd.f32 %v325, %v481
    %v483 = vpop.f32.mrb[0].mxu0
    %v484 = vpop.f32.mrb[0].mxu0
    %v485 = vadd.f32 %v325, %v484
    %v486 = vpop.f32.mrb[0].mxu0
    %487 = vmatprep.mubr.bf16.mxu0 0
    %488 = vmatmul.mubr.bf16.gmra.mrb[0].mxu0 %v301
    %v489 = vpop.f32.mrb[0].mxu0
    %v490 = vadd.f32 %v325, %v489
    %v491 = vpop.f32.mrb[0].mxu0
    %v492 = vpop.f32.mrb[0].mxu0
    %v493 = vadd.f32 %v325, %v492
    %v494 = vpop.f32.mrb[0].mxu0
    %495 = vmatprep.mubr.bf16.mxu0 0
    %496 = vmatmul.mubr.bf16.gmra.mrb[0].mxu0 %v302
    %v497 = vpop.f32.mrb[0].mxu0
    %v498 = vadd.f32 %v325, %v497
    %v499 = vpop.f32.mrb[0].mxu0
    %v500 = vpop.f32.mrb[0].mxu0
    %v501 = vadd.f32 %v325, %v500
    %v502 = vpop.f32.mrb[0].mxu0
    %503 = vmatprep.mubr.bf16.mxu0 0
    %504 = vmatmul.mubr.bf16.gmra.mrb[0].mxu0 %v303
    %v505 = vpop.f32.mrb[0].mxu0
    %v506 = vadd.f32 %v325, %v505
    %v507 = vpop.f32.mrb[0].mxu0
    %v508 = vpop.f32.mrb[0].mxu0
    %v509 = vpop.f32.mrb[0].mxu0
    %510 = vdwg.mxu0
    %v511 = vmax.f32 %v410, 0.0
    %v512 = vmax.f32 %v413, 0.0
    %v513 = vmax.f32 %v418, 0.0
    %v514 = vmax.f32 %v421, 0.0
    %v515 = vmax.f32 %v426, 0.0
    %v516 = vmax.f32 %v429, 0.0
    %v517 = vmax.f32 %v434, 0.0
    %v518 = vmax.f32 %v437, 0.0
    %v519 = vmax.f32 %v442, 0.0
    %v520 = vmax.f32 %v445, 0.0
    %v521 = vmax.f32 %v450, 0.0
    %v522 = vmax.f32 %v453, 0.0
    %v523 = vmax.f32 %v458, 0.0
    %v524 = vmax.f32 %v461, 0.0
    %v525 = vmax.f32 %v466, 0.0
    %v526 = vmax.f32 %v469, 0.0
    %v527 = vmax.f32 %v474, 0.0
    %v528 = vmax.f32 %v477, 0.0
    %v529 = vmax.f32 %v482, 0.0
    %v530 = vmax.f32 %v485, 0.0
    %v531 = vmax.f32 %v490, 0.0
    %v532 = vmax.f32 %v493, 0.0
    %v533 = vmax.f32 %v498, 0.0
    %v534 = vmax.f32 %v501, 0.0
    %v535 = vmax.f32 %v506, 0.0
    %v536 = vld [vmem:[%s5] sm:$0x1]
    %v538 = vlaneseq
    %v539 = vshrl.u32 %v538, 7
    %v540 = vsub.s32 0, %v539
    %v541 = vrot.slane %v536, %v540
    %v543 = vmul.f32 %v511, %v541
    %v544 = vmul.f32 %v512, %v541
    %v545 = vmul.f32 %v513, %v541
    %v546 = vmul.f32 %v514, %v541
    %v547 = vmul.f32 %v515, %v541
    %v548 = vmul.f32 %v516, %v541
    %v549 = vmul.f32 %v517, %v541
    %v550 = vmul.f32 %v518, %v541
    %v551 = vmul.f32 %v519, %v541
    %v552 = vmul.f32 %v520, %v541
    %v553 = vmul.f32 %v521, %v541
    %v554 = vmul.f32 %v522, %v541
    %v555 = vmul.f32 %v523, %v541
    %v556 = vmul.f32 %v524, %v541
    %v557 = vmul.f32 %v525, %v541
    %v558 = vmul.f32 %v526, %v541
    %v559 = vmul.f32 %v527, %v541
    %v560 = vmul.f32 %v528, %v541
    %v561 = vmul.f32 %v529, %v541
    %v562 = vmul.f32 %v530, %v541
    %v563 = vmul.f32 %v531, %v541
    %v564 = vmul.f32 %v532, %v541
    %v565 = vmul.f32 %v533, %v541
    %v566 = vmul.f32 %v534, %v541
    %v567 = vmul.f32 %v535, %v541
    %568 = vadd.xlane.f32.xlu0 %v543
    %v569 = vpop.xlane.xlu0 %568
    %570 = vadd.xlane.f32.xlu0 %v544
    %v571 = vpop.xlane.xlu0 %570
    %572 = vadd.xlane.f32.xlu0 %v545
    %v573 = vpop.xlane.xlu0 %572
    %574 = vadd.xlane.f32.xlu0 %v546
    %v575 = vpop.xlane.xlu0 %574
    %576 = vadd.xlane.f32.xlu0 %v547
    %v577 = vpop.xlane.xlu0 %576
    %578 = vadd.xlane.f32.xlu0 %v548
    %v579 = vpop.xlane.xlu0 %578
    %580 = vadd.xlane.f32.xlu0 %v549
    %v581 = vpop.xlane.xlu0 %580
    %582 = vadd.xlane.f32.xlu0 %v550
    %v583 = vpop.xlane.xlu0 %582
    %584 = vadd.xlane.f32.xlu0 %v551
    %v585 = vpop.xlane.xlu0 %584
    %586 = vadd.xlane.f32.xlu0 %v552
    %v587 = vpop.xlane.xlu0 %586
    %588 = vadd.xlane.f32.xlu0 %v553
    %v589 = vpop.xlane.xlu0 %588
    %590 = vadd.xlane.f32.xlu0 %v554
    %v591 = vpop.xlane.xlu0 %590
    %592 = vadd.xlane.f32.xlu0 %v555
    %v593 = vpop.xlane.xlu0 %592
    %594 = vadd.xlane.f32.xlu0 %v556
    %v595 = vpop.xlane.xlu0 %594
    %596 = vadd.xlane.f32.xlu0 %v557
    %v597 = vpop.xlane.xlu0 %596
    %598 = vadd.xlane.f32.xlu0 %v558
    %v599 = vpop.xlane.xlu0 %598
    %600 = vadd.xlane.f32.xlu0 %v559
    %v601 = vpop.xlane.xlu0 %600
    %602 = vadd.xlane.f32.xlu0 %v560
    %v603 = vpop.xlane.xlu0 %602
    %604 = vadd.xlane.f32.xlu0 %v561
    %v605 = vpop.xlane.xlu0 %604
    %606 = vadd.xlane.f32.xlu0 %v562
    %v607 = vpop.xlane.xlu0 %606
    %608 = vadd.xlane.f32.xlu0 %v563
    %v609 = vpop.xlane.xlu0 %608
    %610 = vadd.xlane.f32.xlu0 %v564
    %v611 = vpop.xlane.xlu0 %610
    %612 = vadd.xlane.f32.xlu0 %v565
    %v613 = vpop.xlane.xlu0 %612
    %614 = vadd.xlane.f32.xlu0 %v566
    %v615 = vpop.xlane.xlu0 %614
    %616 = vadd.xlane.f32.xlu0 %v567
    %v617 = vpop.xlane.xlu0 %616
    %s618 = sld [smem:[#allocation2]]
    %v619 = vstv %s618
    %v620 = vadd.f32 %v569, %v619
    %v621 = vadd.f32 %v571, %v619
    %v622 = vadd.f32 %v573, %v619
    %v623 = vadd.f32 %v575, %v619
    %v624 = vadd.f32 %v577, %v619
    %v625 = vadd.f32 %v579, %v619
    %v626 = vadd.f32 %v581, %v619
    %v627 = vadd.f32 %v583, %v619
    %v628 = vadd.f32 %v585, %v619
    %v629 = vadd.f32 %v587, %v619
    %v630 = vadd.f32 %v589, %v619
    %v631 = vadd.f32 %v591, %v619
    %v632 = vadd.f32 %v593, %v619
    %v633 = vadd.f32 %v595, %v619
    %v634 = vadd.f32 %v597, %v619
    %v635 = vadd.f32 %v599, %v619
    %v636 = vadd.f32 %v601, %v619
    %v637 = vadd.f32 %v603, %v619
    %v638 = vadd.f32 %v605, %v619
    %v639 = vadd.f32 %v607, %v619
    %v640 = vadd.f32 %v609, %v619
    %v641 = vadd.f32 %v611, %v619
    %v642 = vadd.f32 %v613, %v619
    %v643 = vadd.f32 %v615, %v619
    %v644 = vadd.f32 %v617, %v619
    %v670 = vlaneseq
    %v671 = vshrl.u32 %v670, 7
    %v672 = vsub.s32 0, %v671
    %v673 = vrot.slane %v620, %v672
    %v674 = vlaneseq
    %v675 = vshrl.u32 %v674, 7
    %v676 = vsub.s32 1, %v675
    %v677 = vrot.slane %v620, %v676
    %v678 = vlaneseq
    %v679 = vshrl.u32 %v678, 7
    %v680 = vsub.s32 2, %v679
    %v681 = vrot.slane %v620, %v680
    %v682 = vlaneseq
    %v683 = vshrl.u32 %v682, 7
    %v684 = vsub.s32 3, %v683
    %v685 = vrot.slane %v620, %v684
    %v686 = vlaneseq
    %v687 = vshrl.u32 %v686, 7
    %v688 = vsub.s32 4, %v687
    %v689 = vrot.slane %v620, %v688
    %v690 = vlaneseq
    %v691 = vshrl.u32 %v690, 7
    %v692 = vsub.s32 5, %v691
    %v693 = vrot.slane %v620, %v692
    %v694 = vlaneseq
    %v695 = vshrl.u32 %v694, 7
    %v696 = vsub.s32 6, %v695
    %v697 = vrot.slane %v620, %v696
    %v698 = vlaneseq
    %v699 = vshrl.u32 %v698, 7
    %v700 = vsub.s32 7, %v699
    %v701 = vrot.slane %v620, %v700
    %v702 = vlaneseq
    %v703 = vshrl.u32 %v702, 7
    %v704 = vsub.s32 0, %v703
    %v705 = vrot.slane %v621, %v704
    %v706 = vlaneseq
    %v707 = vshrl.u32 %v706, 7
    %v708 = vsub.s32 1, %v707
    %v709 = vrot.slane %v621, %v708
    %v710 = vlaneseq
    %v711 = vshrl.u32 %v710, 7
    %v712 = vsub.s32 2, %v711
    %v713 = vrot.slane %v621, %v712
    %v714 = vlaneseq
    %v715 = vshrl.u32 %v714, 7
    %v716 = vsub.s32 3, %v715
    %v717 = vrot.slane %v621, %v716
    %v718 = vlaneseq
    %v719 = vshrl.u32 %v718, 7
    %v720 = vsub.s32 4, %v719
    %v721 = vrot.slane %v621, %v720
    %v722 = vlaneseq
    %v723 = vshrl.u32 %v722, 7
    %v724 = vsub.s32 5, %v723
    %v725 = vrot.slane %v621, %v724
    %v726 = vlaneseq
    %v727 = vshrl.u32 %v726, 7
    %v728 = vsub.s32 6, %v727
    %v729 = vrot.slane %v621, %v728
    %v730 = vlaneseq
    %v731 = vshrl.u32 %v730, 7
    %v732 = vsub.s32 7, %v731
    %v733 = vrot.slane %v621, %v732
    %v734 = vlaneseq
    %v735 = vshrl.u32 %v734, 7
    %v736 = vsub.s32 0, %v735
    %v737 = vrot.slane %v622, %v736
    %v738 = vlaneseq
    %v739 = vshrl.u32 %v738, 7
    %v740 = vsub.s32 1, %v739
    %v741 = vrot.slane %v622, %v740
    %v742 = vlaneseq
    %v743 = vshrl.u32 %v742, 7
    %v744 = vsub.s32 2, %v743
    %v745 = vrot.slane %v622, %v744
    %v746 = vlaneseq
    %v747 = vshrl.u32 %v746, 7
    %v748 = vsub.s32 3, %v747
    %v749 = vrot.slane %v622, %v748
    %v750 = vlaneseq
    %v751 = vshrl.u32 %v750, 7
    %v752 = vsub.s32 4, %v751
    %v753 = vrot.slane %v622, %v752
    %v754 = vlaneseq
    %v755 = vshrl.u32 %v754, 7
    %v756 = vsub.s32 5, %v755
    %v757 = vrot.slane %v622, %v756
    %v758 = vlaneseq
    %v759 = vshrl.u32 %v758, 7
    %v760 = vsub.s32 6, %v759
    %v761 = vrot.slane %v622, %v760
    %v762 = vlaneseq
    %v763 = vshrl.u32 %v762, 7
    %v764 = vsub.s32 7, %v763
    %v765 = vrot.slane %v622, %v764
    %v766 = vlaneseq
    %v767 = vshrl.u32 %v766, 7
    %v768 = vsub.s32 0, %v767
    %v769 = vrot.slane %v623, %v768
    %v770 = vlaneseq
    %v771 = vshrl.u32 %v770, 7
    %v772 = vsub.s32 1, %v771
    %v773 = vrot.slane %v623, %v772
    %v774 = vlaneseq
    %v775 = vshrl.u32 %v774, 7
    %v776 = vsub.s32 2, %v775
    %v777 = vrot.slane %v623, %v776
    %v778 = vlaneseq
    %v779 = vshrl.u32 %v778, 7
    %v780 = vsub.s32 3, %v779
    %v781 = vrot.slane %v623, %v780
    %v782 = vlaneseq
    %v783 = vshrl.u32 %v782, 7
    %v784 = vsub.s32 4, %v783
    %v785 = vrot.slane %v623, %v784
    %v786 = vlaneseq
    %v787 = vshrl.u32 %v786, 7
    %v788 = vsub.s32 5, %v787
    %v789 = vrot.slane %v623, %v788
    %v790 = vlaneseq
    %v791 = vshrl.u32 %v790, 7
    %v792 = vsub.s32 6, %v791
    %v793 = vrot.slane %v623, %v792
    %v794 = vlaneseq
    %v795 = vshrl.u32 %v794, 7
    %v796 = vsub.s32 7, %v795
    %v797 = vrot.slane %v623, %v796
    %v798 = vlaneseq
    %v799 = vshrl.u32 %v798, 7
    %v800 = vsub.s32 0, %v799
    %v801 = vrot.slane %v624, %v800
    %v802 = vlaneseq
    %v803 = vshrl.u32 %v802, 7
    %v804 = vsub.s32 1, %v803
    %v805 = vrot.slane %v624, %v804
    %v806 = vlaneseq
    %v807 = vshrl.u32 %v806, 7
    %v808 = vsub.s32 2, %v807
    %v809 = vrot.slane %v624, %v808
    %v810 = vlaneseq
    %v811 = vshrl.u32 %v810, 7
    %v812 = vsub.s32 3, %v811
    %v813 = vrot.slane %v624, %v812
    %v814 = vlaneseq
    %v815 = vshrl.u32 %v814, 7
    %v816 = vsub.s32 4, %v815
    %v817 = vrot.slane %v624, %v816
    %v818 = vlaneseq
    %v819 = vshrl.u32 %v818, 7
    %v820 = vsub.s32 5, %v819
    %v821 = vrot.slane %v624, %v820
    %v822 = vlaneseq
    %v823 = vshrl.u32 %v822, 7
    %v824 = vsub.s32 6, %v823
    %v825 = vrot.slane %v624, %v824
    %v826 = vlaneseq
    %v827 = vshrl.u32 %v826, 7
    %v828 = vsub.s32 7, %v827
    %v829 = vrot.slane %v624, %v828
    %v830 = vlaneseq
    %v831 = vshrl.u32 %v830, 7
    %v832 = vsub.s32 0, %v831
    %v833 = vrot.slane %v625, %v832
    %v834 = vlaneseq
    %v835 = vshrl.u32 %v834, 7
    %v836 = vsub.s32 1, %v835
    %v837 = vrot.slane %v625, %v836
    %v838 = vlaneseq
    %v839 = vshrl.u32 %v838, 7
    %v840 = vsub.s32 2, %v839
    %v841 = vrot.slane %v625, %v840
    %v842 = vlaneseq
    %v843 = vshrl.u32 %v842, 7
    %v844 = vsub.s32 3, %v843
    %v845 = vrot.slane %v625, %v844
    %v846 = vlaneseq
    %v847 = vshrl.u32 %v846, 7
    %v848 = vsub.s32 4, %v847
    %v849 = vrot.slane %v625, %v848
    %v850 = vlaneseq
    %v851 = vshrl.u32 %v850, 7
    %v852 = vsub.s32 5, %v851
    %v853 = vrot.slane %v625, %v852
    %v854 = vlaneseq
    %v855 = vshrl.u32 %v854, 7
    %v856 = vsub.s32 6, %v855
    %v857 = vrot.slane %v625, %v856
    %v858 = vlaneseq
    %v859 = vshrl.u32 %v858, 7
    %v860 = vsub.s32 7, %v859
    %v861 = vrot.slane %v625, %v860
    %v862 = vlaneseq
    %v863 = vshrl.u32 %v862, 7
    %v864 = vsub.s32 0, %v863
    %v865 = vrot.slane %v626, %v864
    %v866 = vlaneseq
    %v867 = vshrl.u32 %v866, 7
    %v868 = vsub.s32 1, %v867
    %v869 = vrot.slane %v626, %v868
    %v870 = vlaneseq
    %v871 = vshrl.u32 %v870, 7
    %v872 = vsub.s32 2, %v871
    %v873 = vrot.slane %v626, %v872
    %v874 = vlaneseq
    %v875 = vshrl.u32 %v874, 7
    %v876 = vsub.s32 3, %v875
    %v877 = vrot.slane %v626, %v876
    %v878 = vlaneseq
    %v879 = vshrl.u32 %v878, 7
    %v880 = vsub.s32 4, %v879
    %v881 = vrot.slane %v626, %v880
    %v882 = vlaneseq
    %v883 = vshrl.u32 %v882, 7
    %v884 = vsub.s32 5, %v883
    %v885 = vrot.slane %v626, %v884
    %v886 = vlaneseq
    %v887 = vshrl.u32 %v886, 7
    %v888 = vsub.s32 6, %v887
    %v889 = vrot.slane %v626, %v888
    %v890 = vlaneseq
    %v891 = vshrl.u32 %v890, 7
    %v892 = vsub.s32 7, %v891
    %v893 = vrot.slane %v626, %v892
    %v894 = vlaneseq
    %v895 = vshrl.u32 %v894, 7
    %v896 = vsub.s32 0, %v895
    %v897 = vrot.slane %v627, %v896
    %v898 = vlaneseq
    %v899 = vshrl.u32 %v898, 7
    %v900 = vsub.s32 1, %v899
    %v901 = vrot.slane %v627, %v900
    %v902 = vlaneseq
    %v903 = vshrl.u32 %v902, 7
    %v904 = vsub.s32 2, %v903
    %v905 = vrot.slane %v627, %v904
    %v906 = vlaneseq
    %v907 = vshrl.u32 %v906, 7
    %v908 = vsub.s32 3, %v907
    %v909 = vrot.slane %v627, %v908
    %v910 = vlaneseq
    %v911 = vshrl.u32 %v910, 7
    %v912 = vsub.s32 4, %v911
    %v913 = vrot.slane %v627, %v912
    %v914 = vlaneseq
    %v915 = vshrl.u32 %v914, 7
    %v916 = vsub.s32 5, %v915
    %v917 = vrot.slane %v627, %v916
    %v918 = vlaneseq
    %v919 = vshrl.u32 %v918, 7
    %v920 = vsub.s32 6, %v919
    %v921 = vrot.slane %v627, %v920
    %v922 = vlaneseq
    %v923 = vshrl.u32 %v922, 7
    %v924 = vsub.s32 7, %v923
    %v925 = vrot.slane %v627, %v924
    %v926 = vlaneseq
    %v927 = vshrl.u32 %v926, 7
    %v928 = vsub.s32 0, %v927
    %v929 = vrot.slane %v628, %v928
    %v930 = vlaneseq
    %v931 = vshrl.u32 %v930, 7
    %v932 = vsub.s32 1, %v931
    %v933 = vrot.slane %v628, %v932
    %v934 = vlaneseq
    %v935 = vshrl.u32 %v934, 7
    %v936 = vsub.s32 2, %v935
    %v937 = vrot.slane %v628, %v936
    %v938 = vlaneseq
    %v939 = vshrl.u32 %v938, 7
    %v940 = vsub.s32 3, %v939
    %v941 = vrot.slane %v628, %v940
    %v942 = vlaneseq
    %v943 = vshrl.u32 %v942, 7
    %v944 = vsub.s32 4, %v943
    %v945 = vrot.slane %v628, %v944
    %v946 = vlaneseq
    %v947 = vshrl.u32 %v946, 7
    %v948 = vsub.s32 5, %v947
    %v949 = vrot.slane %v628, %v948
    %v950 = vlaneseq
    %v951 = vshrl.u32 %v950, 7
    %v952 = vsub.s32 6, %v951
    %v953 = vrot.slane %v628, %v952
    %v954 = vlaneseq
    %v955 = vshrl.u32 %v954, 7
    %v956 = vsub.s32 7, %v955
    %v957 = vrot.slane %v628, %v956
    %v958 = vlaneseq
    %v959 = vshrl.u32 %v958, 7
    %v960 = vsub.s32 0, %v959
    %v961 = vrot.slane %v629, %v960
    %v962 = vlaneseq
    %v963 = vshrl.u32 %v962, 7
    %v964 = vsub.s32 1, %v963
    %v965 = vrot.slane %v629, %v964
    %v966 = vlaneseq
    %v967 = vshrl.u32 %v966, 7
    %v968 = vsub.s32 2, %v967
    %v969 = vrot.slane %v629, %v968
    %v970 = vlaneseq
    %v971 = vshrl.u32 %v970, 7
    %v972 = vsub.s32 3, %v971
    %v973 = vrot.slane %v629, %v972
    %v974 = vlaneseq
    %v975 = vshrl.u32 %v974, 7
    %v976 = vsub.s32 4, %v975
    %v977 = vrot.slane %v629, %v976
    %v978 = vlaneseq
    %v979 = vshrl.u32 %v978, 7
    %v980 = vsub.s32 5, %v979
    %v981 = vrot.slane %v629, %v980
    %v982 = vlaneseq
    %v983 = vshrl.u32 %v982, 7
    %v984 = vsub.s32 6, %v983
    %v985 = vrot.slane %v629, %v984
    %v986 = vlaneseq
    %v987 = vshrl.u32 %v986, 7
    %v988 = vsub.s32 7, %v987
    %v989 = vrot.slane %v629, %v988
    %v990 = vlaneseq
    %v991 = vshrl.u32 %v990, 7
    %v992 = vsub.s32 0, %v991
    %v993 = vrot.slane %v630, %v992
    %v994 = vlaneseq
    %v995 = vshrl.u32 %v994, 7
    %v996 = vsub.s32 1, %v995
    %v997 = vrot.slane %v630, %v996
    %v998 = vlaneseq
    %v999 = vshrl.u32 %v998, 7
    %v1000 = vsub.s32 2, %v999
    %v1001 = vrot.slane %v630, %v1000
    %v1002 = vlaneseq
    %v1003 = vshrl.u32 %v1002, 7
    %v1004 = vsub.s32 3, %v1003
    %v1005 = vrot.slane %v630, %v1004
    %v1006 = vlaneseq
    %v1007 = vshrl.u32 %v1006, 7
    %v1008 = vsub.s32 4, %v1007
    %v1009 = vrot.slane %v630, %v1008
    %v1010 = vlaneseq
    %v1011 = vshrl.u32 %v1010, 7
    %v1012 = vsub.s32 5, %v1011
    %v1013 = vrot.slane %v630, %v1012
    %v1014 = vlaneseq
    %v1015 = vshrl.u32 %v1014, 7
    %v1016 = vsub.s32 6, %v1015
    %v1017 = vrot.slane %v630, %v1016
    %v1018 = vlaneseq
    %v1019 = vshrl.u32 %v1018, 7
    %v1020 = vsub.s32 7, %v1019
    %v1021 = vrot.slane %v630, %v1020
    %v1022 = vlaneseq
    %v1023 = vshrl.u32 %v1022, 7
    %v1024 = vsub.s32 0, %v1023
    %v1025 = vrot.slane %v631, %v1024
    %v1026 = vlaneseq
    %v1027 = vshrl.u32 %v1026, 7
    %v1028 = vsub.s32 1, %v1027
    %v1029 = vrot.slane %v631, %v1028
    %v1030 = vlaneseq
    %v1031 = vshrl.u32 %v1030, 7
    %v1032 = vsub.s32 2, %v1031
    %v1033 = vrot.slane %v631, %v1032
    %v1034 = vlaneseq
    %v1035 = vshrl.u32 %v1034, 7
    %v1036 = vsub.s32 3, %v1035
    %v1037 = vrot.slane %v631, %v1036
    %v1038 = vlaneseq
    %v1039 = vshrl.u32 %v1038, 7
    %v1040 = vsub.s32 4, %v1039
    %v1041 = vrot.slane %v631, %v1040
    %v1042 = vlaneseq
    %v1043 = vshrl.u32 %v1042, 7
    %v1044 = vsub.s32 5, %v1043
    %v1045 = vrot.slane %v631, %v1044
    %v1046 = vlaneseq
    %v1047 = vshrl.u32 %v1046, 7
    %v1048 = vsub.s32 6, %v1047
    %v1049 = vrot.slane %v631, %v1048
    %v1050 = vlaneseq
    %v1051 = vshrl.u32 %v1050, 7
    %v1052 = vsub.s32 7, %v1051
    %v1053 = vrot.slane %v631, %v1052
    %v1054 = vlaneseq
    %v1055 = vshrl.u32 %v1054, 7
    %v1056 = vsub.s32 0, %v1055
    %v1057 = vrot.slane %v632, %v1056
    %v1058 = vlaneseq
    %v1059 = vshrl.u32 %v1058, 7
    %v1060 = vsub.s32 1, %v1059
    %v1061 = vrot.slane %v632, %v1060
    %v1062 = vlaneseq
    %v1063 = vshrl.u32 %v1062, 7
    %v1064 = vsub.s32 2, %v1063
    %v1065 = vrot.slane %v632, %v1064
    %v1066 = vlaneseq
    %v1067 = vshrl.u32 %v1066, 7
    %v1068 = vsub.s32 3, %v1067
    %v1069 = vrot.slane %v632, %v1068
    %v1070 = vlaneseq
    %v1071 = vshrl.u32 %v1070, 7
    %v1072 = vsub.s32 4, %v1071
    %v1073 = vrot.slane %v632, %v1072
    %v1074 = vlaneseq
    %v1075 = vshrl.u32 %v1074, 7
    %v1076 = vsub.s32 5, %v1075
    %v1077 = vrot.slane %v632, %v1076
    %v1078 = vlaneseq
    %v1079 = vshrl.u32 %v1078, 7
    %v1080 = vsub.s32 6, %v1079
    %v1081 = vrot.slane %v632, %v1080
    %v1082 = vlaneseq
    %v1083 = vshrl.u32 %v1082, 7
    %v1084 = vsub.s32 7, %v1083
    %v1085 = vrot.slane %v632, %v1084
    %v1086 = vlaneseq
    %v1087 = vshrl.u32 %v1086, 7
    %v1088 = vsub.s32 0, %v1087
    %v1089 = vrot.slane %v633, %v1088
    %v1090 = vlaneseq
    %v1091 = vshrl.u32 %v1090, 7
    %v1092 = vsub.s32 1, %v1091
    %v1093 = vrot.slane %v633, %v1092
    %v1094 = vlaneseq
    %v1095 = vshrl.u32 %v1094, 7
    %v1096 = vsub.s32 2, %v1095
    %v1097 = vrot.slane %v633, %v1096
    %v1098 = vlaneseq
    %v1099 = vshrl.u32 %v1098, 7
    %v1100 = vsub.s32 3, %v1099
    %v1101 = vrot.slane %v633, %v1100
    %v1102 = vlaneseq
    %v1103 = vshrl.u32 %v1102, 7
    %v1104 = vsub.s32 4, %v1103
    %v1105 = vrot.slane %v633, %v1104
    %v1106 = vlaneseq
    %v1107 = vshrl.u32 %v1106, 7
    %v1108 = vsub.s32 5, %v1107
    %v1109 = vrot.slane %v633, %v1108
    %v1110 = vlaneseq
    %v1111 = vshrl.u32 %v1110, 7
    %v1112 = vsub.s32 6, %v1111
    %v1113 = vrot.slane %v633, %v1112
    %v1114 = vlaneseq
    %v1115 = vshrl.u32 %v1114, 7
    %v1116 = vsub.s32 7, %v1115
    %v1117 = vrot.slane %v633, %v1116
    %v1118 = vlaneseq
    %v1119 = vshrl.u32 %v1118, 7
    %v1120 = vsub.s32 0, %v1119
    %v1121 = vrot.slane %v634, %v1120
    %v1122 = vlaneseq
    %v1123 = vshrl.u32 %v1122, 7
    %v1124 = vsub.s32 1, %v1123
    %v1125 = vrot.slane %v634, %v1124
    %v1126 = vlaneseq
    %v1127 = vshrl.u32 %v1126, 7
    %v1128 = vsub.s32 2, %v1127
    %v1129 = vrot.slane %v634, %v1128
    %v1130 = vlaneseq
    %v1131 = vshrl.u32 %v1130, 7
    %v1132 = vsub.s32 3, %v1131
    %v1133 = vrot.slane %v634, %v1132
    %v1134 = vlaneseq
    %v1135 = vshrl.u32 %v1134, 7
    %v1136 = vsub.s32 4, %v1135
    %v1137 = vrot.slane %v634, %v1136
    %v1138 = vlaneseq
    %v1139 = vshrl.u32 %v1138, 7
    %v1140 = vsub.s32 5, %v1139
    %v1141 = vrot.slane %v634, %v1140
    %v1142 = vlaneseq
    %v1143 = vshrl.u32 %v1142, 7
    %v1144 = vsub.s32 6, %v1143
    %v1145 = vrot.slane %v634, %v1144
    %v1146 = vlaneseq
    %v1147 = vshrl.u32 %v1146, 7
    %v1148 = vsub.s32 7, %v1147
    %v1149 = vrot.slane %v634, %v1148
    %v1150 = vlaneseq
    %v1151 = vshrl.u32 %v1150, 7
    %v1152 = vsub.s32 0, %v1151
    %v1153 = vrot.slane %v635, %v1152
    %v1154 = vlaneseq
    %v1155 = vshrl.u32 %v1154, 7
    %v1156 = vsub.s32 1, %v1155
    %v1157 = vrot.slane %v635, %v1156
    %v1158 = vlaneseq
    %v1159 = vshrl.u32 %v1158, 7
    %v1160 = vsub.s32 2, %v1159
    %v1161 = vrot.slane %v635, %v1160
    %v1162 = vlaneseq
    %v1163 = vshrl.u32 %v1162, 7
    %v1164 = vsub.s32 3, %v1163
    %v1165 = vrot.slane %v635, %v1164
    %v1166 = vlaneseq
    %v1167 = vshrl.u32 %v1166, 7
    %v1168 = vsub.s32 4, %v1167
    %v1169 = vrot.slane %v635, %v1168
    %v1170 = vlaneseq
    %v1171 = vshrl.u32 %v1170, 7
    %v1172 = vsub.s32 5, %v1171
    %v1173 = vrot.slane %v635, %v1172
    %v1174 = vlaneseq
    %v1175 = vshrl.u32 %v1174, 7
    %v1176 = vsub.s32 6, %v1175
    %v1177 = vrot.slane %v635, %v1176
    %v1178 = vlaneseq
    %v1179 = vshrl.u32 %v1178, 7
    %v1180 = vsub.s32 7, %v1179
    %v1181 = vrot.slane %v635, %v1180
    %v1182 = vlaneseq
    %v1183 = vshrl.u32 %v1182, 7
    %v1184 = vsub.s32 0, %v1183
    %v1185 = vrot.slane %v636, %v1184
    %v1186 = vlaneseq
    %v1187 = vshrl.u32 %v1186, 7
    %v1188 = vsub.s32 1, %v1187
    %v1189 = vrot.slane %v636, %v1188
    %v1190 = vlaneseq
    %v1191 = vshrl.u32 %v1190, 7
    %v1192 = vsub.s32 2, %v1191
    %v1193 = vrot.slane %v636, %v1192
    %v1194 = vlaneseq
    %v1195 = vshrl.u32 %v1194, 7
    %v1196 = vsub.s32 3, %v1195
    %v1197 = vrot.slane %v636, %v1196
    %v1198 = vlaneseq
    %v1199 = vshrl.u32 %v1198, 7
    %v1200 = vsub.s32 4, %v1199
    %v1201 = vrot.slane %v636, %v1200
    %v1202 = vlaneseq
    %v1203 = vshrl.u32 %v1202, 7
    %v1204 = vsub.s32 5, %v1203
    %v1205 = vrot.slane %v636, %v1204
    %v1206 = vlaneseq
    %v1207 = vshrl.u32 %v1206, 7
    %v1208 = vsub.s32 6, %v1207
    %v1209 = vrot.slane %v636, %v1208
    %v1210 = vlaneseq
    %v1211 = vshrl.u32 %v1210, 7
    %v1212 = vsub.s32 7, %v1211
    %v1213 = vrot.slane %v636, %v1212
    %v1214 = vlaneseq
    %v1215 = vshrl.u32 %v1214, 7
    %v1216 = vsub.s32 0, %v1215
    %v1217 = vrot.slane %v637, %v1216
    %v1218 = vlaneseq
    %v1219 = vshrl.u32 %v1218, 7
    %v1220 = vsub.s32 1, %v1219
    %v1221 = vrot.slane %v637, %v1220
    %v1222 = vlaneseq
    %v1223 = vshrl.u32 %v1222, 7
    %v1224 = vsub.s32 2, %v1223
    %v1225 = vrot.slane %v637, %v1224
    %v1226 = vlaneseq
    %v1227 = vshrl.u32 %v1226, 7
    %v1228 = vsub.s32 3, %v1227
    %v1229 = vrot.slane %v637, %v1228
    %v1230 = vlaneseq
    %v1231 = vshrl.u32 %v1230, 7
    %v1232 = vsub.s32 4, %v1231
    %v1233 = vrot.slane %v637, %v1232
    %v1234 = vlaneseq
    %v1235 = vshrl.u32 %v1234, 7
    %v1236 = vsub.s32 5, %v1235
    %v1237 = vrot.slane %v637, %v1236
    %v1238 = vlaneseq
    %v1239 = vshrl.u32 %v1238, 7
    %v1240 = vsub.s32 6, %v1239
    %v1241 = vrot.slane %v637, %v1240
    %v1242 = vlaneseq
    %v1243 = vshrl.u32 %v1242, 7
    %v1244 = vsub.s32 7, %v1243
    %v1245 = vrot.slane %v637, %v1244
    %v1246 = vlaneseq
    %v1247 = vshrl.u32 %v1246, 7
    %v1248 = vsub.s32 0, %v1247
    %v1249 = vrot.slane %v638, %v1248
    %v1250 = vlaneseq
    %v1251 = vshrl.u32 %v1250, 7
    %v1252 = vsub.s32 1, %v1251
    %v1253 = vrot.slane %v638, %v1252
    %v1254 = vlaneseq
    %v1255 = vshrl.u32 %v1254, 7
    %v1256 = vsub.s32 2, %v1255
    %v1257 = vrot.slane %v638, %v1256
    %v1258 = vlaneseq
    %v1259 = vshrl.u32 %v1258, 7
    %v1260 = vsub.s32 3, %v1259
    %v1261 = vrot.slane %v638, %v1260
    %v1262 = vlaneseq
    %v1263 = vshrl.u32 %v1262, 7
    %v1264 = vsub.s32 4, %v1263
    %v1265 = vrot.slane %v638, %v1264
    %v1266 = vlaneseq
    %v1267 = vshrl.u32 %v1266, 7
    %v1268 = vsub.s32 5, %v1267
    %v1269 = vrot.slane %v638, %v1268
    %v1270 = vlaneseq
    %v1271 = vshrl.u32 %v1270, 7
    %v1272 = vsub.s32 6, %v1271
    %v1273 = vrot.slane %v638, %v1272
    %v1274 = vlaneseq
    %v1275 = vshrl.u32 %v1274, 7
    %v1276 = vsub.s32 7, %v1275
    %v1277 = vrot.slane %v638, %v1276
    %v1278 = vlaneseq
    %v1279 = vshrl.u32 %v1278, 7
    %v1280 = vsub.s32 0, %v1279
    %v1281 = vrot.slane %v639, %v1280
    %v1282 = vlaneseq
    %v1283 = vshrl.u32 %v1282, 7
    %v1284 = vsub.s32 1, %v1283
    %v1285 = vrot.slane %v639, %v1284
    %v1286 = vlaneseq
    %v1287 = vshrl.u32 %v1286, 7
    %v1288 = vsub.s32 2, %v1287
    %v1289 = vrot.slane %v639, %v1288
    %v1290 = vlaneseq
    %v1291 = vshrl.u32 %v1290, 7
    %v1292 = vsub.s32 3, %v1291
    %v1293 = vrot.slane %v639, %v1292
    %v1294 = vlaneseq
    %v1295 = vshrl.u32 %v1294, 7
    %v1296 = vsub.s32 4, %v1295
    %v1297 = vrot.slane %v639, %v1296
    %v1298 = vlaneseq
    %v1299 = vshrl.u32 %v1298, 7
    %v1300 = vsub.s32 5, %v1299
    %v1301 = vrot.slane %v639, %v1300
    %v1302 = vlaneseq
    %v1303 = vshrl.u32 %v1302, 7
    %v1304 = vsub.s32 6, %v1303
    %v1305 = vrot.slane %v639, %v1304
    %v1306 = vlaneseq
    %v1307 = vshrl.u32 %v1306, 7
    %v1308 = vsub.s32 7, %v1307
    %v1309 = vrot.slane %v639, %v1308
    %v1310 = vlaneseq
    %v1311 = vshrl.u32 %v1310, 7
    %v1312 = vsub.s32 0, %v1311
    %v1313 = vrot.slane %v640, %v1312
    %v1314 = vlaneseq
    %v1315 = vshrl.u32 %v1314, 7
    %v1316 = vsub.s32 1, %v1315
    %v1317 = vrot.slane %v640, %v1316
    %v1318 = vlaneseq
    %v1319 = vshrl.u32 %v1318, 7
    %v1320 = vsub.s32 2, %v1319
    %v1321 = vrot.slane %v640, %v1320
    %v1322 = vlaneseq
    %v1323 = vshrl.u32 %v1322, 7
    %v1324 = vsub.s32 3, %v1323
    %v1325 = vrot.slane %v640, %v1324
    %v1326 = vlaneseq
    %v1327 = vshrl.u32 %v1326, 7
    %v1328 = vsub.s32 4, %v1327
    %v1329 = vrot.slane %v640, %v1328
    %v1330 = vlaneseq
    %v1331 = vshrl.u32 %v1330, 7
    %v1332 = vsub.s32 5, %v1331
    %v1333 = vrot.slane %v640, %v1332
    %v1334 = vlaneseq
    %v1335 = vshrl.u32 %v1334, 7
    %v1336 = vsub.s32 6, %v1335
    %v1337 = vrot.slane %v640, %v1336
    %v1338 = vlaneseq
    %v1339 = vshrl.u32 %v1338, 7
    %v1340 = vsub.s32 7, %v1339
    %v1341 = vrot.slane %v640, %v1340
    %v1342 = vlaneseq
    %v1343 = vshrl.u32 %v1342, 7
    %v1344 = vsub.s32 0, %v1343
    %v1345 = vrot.slane %v641, %v1344
    %v1346 = vlaneseq
    %v1347 = vshrl.u32 %v1346, 7
    %v1348 = vsub.s32 1, %v1347
    %v1349 = vrot.slane %v641, %v1348
    %v1350 = vlaneseq
    %v1351 = vshrl.u32 %v1350, 7
    %v1352 = vsub.s32 2, %v1351
    %v1353 = vrot.slane %v641, %v1352
    %v1354 = vlaneseq
    %v1355 = vshrl.u32 %v1354, 7
    %v1356 = vsub.s32 3, %v1355
    %v1357 = vrot.slane %v641, %v1356
    %v1358 = vlaneseq
    %v1359 = vshrl.u32 %v1358, 7
    %v1360 = vsub.s32 4, %v1359
    %v1361 = vrot.slane %v641, %v1360
    %v1362 = vlaneseq
    %v1363 = vshrl.u32 %v1362, 7
    %v1364 = vsub.s32 5, %v1363
    %v1365 = vrot.slane %v641, %v1364
    %v1366 = vlaneseq
    %v1367 = vshrl.u32 %v1366, 7
    %v1368 = vsub.s32 6, %v1367
    %v1369 = vrot.slane %v641, %v1368
    %v1370 = vlaneseq
    %v1371 = vshrl.u32 %v1370, 7
    %v1372 = vsub.s32 7, %v1371
    %v1373 = vrot.slane %v641, %v1372
    %v1374 = vlaneseq
    %v1375 = vshrl.u32 %v1374, 7
    %v1376 = vsub.s32 0, %v1375
    %v1377 = vrot.slane %v642, %v1376
    %v1378 = vlaneseq
    %v1379 = vshrl.u32 %v1378, 7
    %v1380 = vsub.s32 1, %v1379
    %v1381 = vrot.slane %v642, %v1380
    %v1382 = vlaneseq
    %v1383 = vshrl.u32 %v1382, 7
    %v1384 = vsub.s32 2, %v1383
    %v1385 = vrot.slane %v642, %v1384
    %v1386 = vlaneseq
    %v1387 = vshrl.u32 %v1386, 7
    %v1388 = vsub.s32 3, %v1387
    %v1389 = vrot.slane %v642, %v1388
    %v1390 = vlaneseq
    %v1391 = vshrl.u32 %v1390, 7
    %v1392 = vsub.s32 4, %v1391
    %v1393 = vrot.slane %v642, %v1392
    %v1394 = vlaneseq
    %v1395 = vshrl.u32 %v1394, 7
    %v1396 = vsub.s32 5, %v1395
    %v1397 = vrot.slane %v642, %v1396
    %v1398 = vlaneseq
    %v1399 = vshrl.u32 %v1398, 7
    %v1400 = vsub.s32 6, %v1399
    %v1401 = vrot.slane %v642, %v1400
    %v1402 = vlaneseq
    %v1403 = vshrl.u32 %v1402, 7
    %v1404 = vsub.s32 7, %v1403
    %v1405 = vrot.slane %v642, %v1404
    %v1406 = vlaneseq
    %v1407 = vshrl.u32 %v1406, 7
    %v1408 = vsub.s32 0, %v1407
    %v1409 = vrot.slane %v643, %v1408
    %v1410 = vlaneseq
    %v1411 = vshrl.u32 %v1410, 7
    %v1412 = vsub.s32 1, %v1411
    %v1413 = vrot.slane %v643, %v1412
    %v1414 = vlaneseq
    %v1415 = vshrl.u32 %v1414, 7
    %v1416 = vsub.s32 2, %v1415
    %v1417 = vrot.slane %v643, %v1416
    %v1418 = vlaneseq
    %v1419 = vshrl.u32 %v1418, 7
    %v1420 = vsub.s32 3, %v1419
    %v1421 = vrot.slane %v643, %v1420
    %v1422 = vlaneseq
    %v1423 = vshrl.u32 %v1422, 7
    %v1424 = vsub.s32 4, %v1423
    %v1425 = vrot.slane %v643, %v1424
    %v1426 = vlaneseq
    %v1427 = vshrl.u32 %v1426, 7
    %v1428 = vsub.s32 5, %v1427
    %v1429 = vrot.slane %v643, %v1428
    %v1430 = vlaneseq
    %v1431 = vshrl.u32 %v1430, 7
    %v1432 = vsub.s32 6, %v1431
    %v1433 = vrot.slane %v643, %v1432
    %v1434 = vlaneseq
    %v1435 = vshrl.u32 %v1434, 7
    %v1436 = vsub.s32 7, %v1435
    %v1437 = vrot.slane %v643, %v1436
    %v1438 = vlaneseq
    %v1439 = vshrl.u32 %v1438, 7
    %v1440 = vsub.s32 0, %v1439
    %v1441 = vrot.slane %v644, %v1440
    %v1442 = vlaneseq
    %v1443 = vshrl.u32 %v1442, 7
    %v1444 = vsub.s32 1, %v1443
    %v1445 = vrot.slane %v644, %v1444
    %v1446 = vlaneseq
    %v1447 = vshrl.u32 %v1446, 7
    %v1448 = vsub.s32 2, %v1447
    %v1449 = vrot.slane %v644, %v1448
    %v1450 = vlaneseq
    %v1451 = vshrl.u32 %v1450, 7
    %v1452 = vsub.s32 3, %v1451
    %v1453 = vrot.slane %v644, %v1452
    %v1454 = vlaneseq
    %v1455 = vshrl.u32 %v1454, 7
    %v1456 = vsub.s32 4, %v1455
    %v1457 = vrot.slane %v644, %v1456
    %v1458 = vlaneseq
    %v1459 = vshrl.u32 %v1458, 7
    %v1460 = vsub.s32 5, %v1459
    %v1461 = vrot.slane %v644, %v1460
    %v1462 = vlaneseq
    %v1463 = vshrl.u32 %v1462, 7
    %v1464 = vsub.s32 6, %v1463
    %v1465 = vrot.slane %v644, %v1464
    %v1466 = vlaneseq
    %v1467 = vshrl.u32 %v1466, 7
    %v1468 = vsub.s32 7, %v1467
    %v1469 = vrot.slane %v644, %v1468
    %v1470 = vcombine.low %v673, %v677
    %v1471 = vcombine.low %v681, %v685
    %v1472 = vcombine.low %v689, %v693
    %v1473 = vcombine.low %v697, %v701
    %v1475 = vunpack.c.l.s4 1966171168
    %v1476 = vunpack.c.0.s8 %v1475
    %v1477 = vlaneseq
    %v1478 = vshrl.u32 %v1477, 7
    %v1479 = vsub.s32 %v1476, %v1478
    %v1480 = vrot.slane %v1470, %v1479
    %v1482 = vunpack.c.l.s4 1966171168
    %v1483 = vunpack.c.0.s8 %v1482
    %v1484 = vlaneseq
    %v1485 = vshrl.u32 %v1484, 7
    %v1486 = vsub.s32 %v1483, %v1485
    %v1487 = vrot.slane %v1471, %v1486
    %v1489 = vunpack.c.l.s4 1966171168
    %v1490 = vunpack.c.0.s8 %v1489
    %v1491 = vlaneseq
    %v1492 = vshrl.u32 %v1491, 7
    %v1493 = vsub.s32 %v1490, %v1492
    %v1494 = vrot.slane %v1472, %v1493
    %v1496 = vunpack.c.l.s4 1966171168
    %v1497 = vunpack.c.0.s8 %v1496
    %v1498 = vlaneseq
    %v1499 = vshrl.u32 %v1498, 7
    %v1500 = vsub.s32 %v1497, %v1499
    %v1501 = vrot.slane %v1473, %v1500
    %v1502 = vcombine.low %v1480, %v1487
    %v1503 = vcombine.low %v1494, %v1501
    %v1505 = vunpack.c.l.s4 1966171168
    %v1506 = vunpack.c.0.s8 %v1505
    %v1507 = vlaneseq
    %v1508 = vshrl.u32 %v1507, 7
    %v1509 = vsub.s32 %v1506, %v1508
    %v1510 = vrot.slane %v1502, %v1509
    %v1512 = vunpack.c.l.s4 1966171168
    %v1513 = vunpack.c.0.s8 %v1512
    %v1514 = vlaneseq
    %v1515 = vshrl.u32 %v1514, 7
    %v1516 = vsub.s32 %v1513, %v1515
    %v1517 = vrot.slane %v1503, %v1516
    %v1518 = vcombine.low %v1510, %v1517
    %v1519 = vcombine.low %v705, %v709
    %v1520 = vcombine.low %v713, %v717
    %v1521 = vcombine.low %v721, %v725
    %v1522 = vcombine.low %v729, %v733
    %v1524 = vunpack.c.l.s4 1966171168
    %v1525 = vunpack.c.0.s8 %v1524
    %v1526 = vlaneseq
    %v1527 = vshrl.u32 %v1526, 7
    %v1528 = vsub.s32 %v1525, %v1527
    %v1529 = vrot.slane %v1519, %v1528
    %v1531 = vunpack.c.l.s4 1966171168
    %v1532 = vunpack.c.0.s8 %v1531
    %v1533 = vlaneseq
    %v1534 = vshrl.u32 %v1533, 7
    %v1535 = vsub.s32 %v1532, %v1534
    %v1536 = vrot.slane %v1520, %v1535
    %v1538 = vunpack.c.l.s4 1966171168
    %v1539 = vunpack.c.0.s8 %v1538
    %v1540 = vlaneseq
    %v1541 = vshrl.u32 %v1540, 7
    %v1542 = vsub.s32 %v1539, %v1541
    %v1543 = vrot.slane %v1521, %v1542
    %v1545 = vunpack.c.l.s4 1966171168
    %v1546 = vunpack.c.0.s8 %v1545
    %v1547 = vlaneseq
    %v1548 = vshrl.u32 %v1547, 7
    %v1549 = vsub.s32 %v1546, %v1548
    %v1550 = vrot.slane %v1522, %v1549
    %v1551 = vcombine.low %v1529, %v1536
    %v1552 = vcombine.low %v1543, %v1550
    %v1554 = vunpack.c.l.s4 1966171168
    %v1555 = vunpack.c.0.s8 %v1554
    %v1556 = vlaneseq
    %v1557 = vshrl.u32 %v1556, 7
    %v1558 = vsub.s32 %v1555, %v1557
    %v1559 = vrot.slane %v1551, %v1558
    %v1561 = vunpack.c.l.s4 1966171168
    %v1562 = vunpack.c.0.s8 %v1561
    %v1563 = vlaneseq
    %v1564 = vshrl.u32 %v1563, 7
    %v1565 = vsub.s32 %v1562, %v1564
    %v1566 = vrot.slane %v1552, %v1565
    %v1567 = vcombine.low %v1559, %v1566
    %v1568 = vcombine.low %v737, %v741
    %v1569 = vcombine.low %v745, %v749
    %v1570 = vcombine.low %v753, %v757
    %v1571 = vcombine.low %v761, %v765
    %v1573 = vunpack.c.l.s4 1966171168
    %v1574 = vunpack.c.0.s8 %v1573
    %v1575 = vlaneseq
    %v1576 = vshrl.u32 %v1575, 7
    %v1577 = vsub.s32 %v1574, %v1576
    %v1578 = vrot.slane %v1568, %v1577
    %v1580 = vunpack.c.l.s4 1966171168
    %v1581 = vunpack.c.0.s8 %v1580
    %v1582 = vlaneseq
    %v1583 = vshrl.u32 %v1582, 7
    %v1584 = vsub.s32 %v1581, %v1583
    %v1585 = vrot.slane %v1569, %v1584
    %v1587 = vunpack.c.l.s4 1966171168
    %v1588 = vunpack.c.0.s8 %v1587
    %v1589 = vlaneseq
    %v1590 = vshrl.u32 %v1589, 7
    %v1591 = vsub.s32 %v1588, %v1590
    %v1592 = vrot.slane %v1570, %v1591
    %v1594 = vunpack.c.l.s4 1966171168
    %v1595 = vunpack.c.0.s8 %v1594
    %v1596 = vlaneseq
    %v1597 = vshrl.u32 %v1596, 7
    %v1598 = vsub.s32 %v1595, %v1597
    %v1599 = vrot.slane %v1571, %v1598
    %v1600 = vcombine.low %v1578, %v1585
    %v1601 = vcombine.low %v1592, %v1599
    %v1603 = vunpack.c.l.s4 1966171168
    %v1604 = vunpack.c.0.s8 %v1603
    %v1605 = vlaneseq
    %v1606 = vshrl.u32 %v1605, 7
    %v1607 = vsub.s32 %v1604, %v1606
    %v1608 = vrot.slane %v1600, %v1607
    %v1610 = vunpack.c.l.s4 1966171168
    %v1611 = vunpack.c.0.s8 %v1610
    %v1612 = vlaneseq
    %v1613 = vshrl.u32 %v1612, 7
    %v1614 = vsub.s32 %v1611, %v1613
    %v1615 = vrot.slane %v1601, %v1614
    %v1616 = vcombine.low %v1608, %v1615
    %v1617 = vcombine.low %v769, %v773
    %v1618 = vcombine.low %v777, %v781
    %v1619 = vcombine.low %v785, %v789
    %v1620 = vcombine.low %v793, %v797
    %v1622 = vunpack.c.l.s4 1966171168
    %v1623 = vunpack.c.0.s8 %v1622
    %v1624 = vlaneseq
    %v1625 = vshrl.u32 %v1624, 7
    %v1626 = vsub.s32 %v1623, %v1625
    %v1627 = vrot.slane %v1617, %v1626
    %v1629 = vunpack.c.l.s4 1966171168
    %v1630 = vunpack.c.0.s8 %v1629
    %v1631 = vlaneseq
    %v1632 = vshrl.u32 %v1631, 7
    %v1633 = vsub.s32 %v1630, %v1632
    %v1634 = vrot.slane %v1618, %v1633
    %v1636 = vunpack.c.l.s4 1966171168
    %v1637 = vunpack.c.0.s8 %v1636
    %v1638 = vlaneseq
    %v1639 = vshrl.u32 %v1638, 7
    %v1640 = vsub.s32 %v1637, %v1639
    %v1641 = vrot.slane %v1619, %v1640
    %v1643 = vunpack.c.l.s4 1966171168
    %v1644 = vunpack.c.0.s8 %v1643
    %v1645 = vlaneseq
    %v1646 = vshrl.u32 %v1645, 7
    %v1647 = vsub.s32 %v1644, %v1646
    %v1648 = vrot.slane %v1620, %v1647
    %v1649 = vcombine.low %v1627, %v1634
    %v1650 = vcombine.low %v1641, %v1648
    %v1652 = vunpack.c.l.s4 1966171168
    %v1653 = vunpack.c.0.s8 %v1652
    %v1654 = vlaneseq
    %v1655 = vshrl.u32 %v1654, 7
    %v1656 = vsub.s32 %v1653, %v1655
    %v1657 = vrot.slane %v1649, %v1656
    %v1659 = vunpack.c.l.s4 1966171168
    %v1660 = vunpack.c.0.s8 %v1659
    %v1661 = vlaneseq
    %v1662 = vshrl.u32 %v1661, 7
    %v1663 = vsub.s32 %v1660, %v1662
    %v1664 = vrot.slane %v1650, %v1663
    %v1665 = vcombine.low %v1657, %v1664
    %v1666 = vcombine.low %v801, %v805
    %v1667 = vcombine.low %v809, %v813
    %v1668 = vcombine.low %v817, %v821
    %v1669 = vcombine.low %v825, %v829
    %v1671 = vunpack.c.l.s4 1966171168
    %v1672 = vunpack.c.0.s8 %v1671
    %v1673 = vlaneseq
    %v1674 = vshrl.u32 %v1673, 7
    %v1675 = vsub.s32 %v1672, %v1674
    %v1676 = vrot.slane %v1666, %v1675
    %v1678 = vunpack.c.l.s4 1966171168
    %v1679 = vunpack.c.0.s8 %v1678
    %v1680 = vlaneseq
    %v1681 = vshrl.u32 %v1680, 7
    %v1682 = vsub.s32 %v1679, %v1681
    %v1683 = vrot.slane %v1667, %v1682
    %v1685 = vunpack.c.l.s4 1966171168
    %v1686 = vunpack.c.0.s8 %v1685
    %v1687 = vlaneseq
    %v1688 = vshrl.u32 %v1687, 7
    %v1689 = vsub.s32 %v1686, %v1688
    %v1690 = vrot.slane %v1668, %v1689
    %v1692 = vunpack.c.l.s4 1966171168
    %v1693 = vunpack.c.0.s8 %v1692
    %v1694 = vlaneseq
    %v1695 = vshrl.u32 %v1694, 7
    %v1696 = vsub.s32 %v1693, %v1695
    %v1697 = vrot.slane %v1669, %v1696
    %v1698 = vcombine.low %v1676, %v1683
    %v1699 = vcombine.low %v1690, %v1697
    %v1701 = vunpack.c.l.s4 1966171168
    %v1702 = vunpack.c.0.s8 %v1701
    %v1703 = vlaneseq
    %v1704 = vshrl.u32 %v1703, 7
    %v1705 = vsub.s32 %v1702, %v1704
    %v1706 = vrot.slane %v1698, %v1705
    %v1708 = vunpack.c.l.s4 1966171168
    %v1709 = vunpack.c.0.s8 %v1708
    %v1710 = vlaneseq
    %v1711 = vshrl.u32 %v1710, 7
    %v1712 = vsub.s32 %v1709, %v1711
    %v1713 = vrot.slane %v1699, %v1712
    %v1714 = vcombine.low %v1706, %v1713
    %v1715 = vcombine.low %v833, %v837
    %v1716 = vcombine.low %v841, %v845
    %v1717 = vcombine.low %v849, %v853
    %v1718 = vcombine.low %v857, %v861
    %v1720 = vunpack.c.l.s4 1966171168
    %v1721 = vunpack.c.0.s8 %v1720
    %v1722 = vlaneseq
    %v1723 = vshrl.u32 %v1722, 7
    %v1724 = vsub.s32 %v1721, %v1723
    %v1725 = vrot.slane %v1715, %v1724
    %v1727 = vunpack.c.l.s4 1966171168
    %v1728 = vunpack.c.0.s8 %v1727
    %v1729 = vlaneseq
    %v1730 = vshrl.u32 %v1729, 7
    %v1731 = vsub.s32 %v1728, %v1730
    %v1732 = vrot.slane %v1716, %v1731
    %v1734 = vunpack.c.l.s4 1966171168
    %v1735 = vunpack.c.0.s8 %v1734
    %v1736 = vlaneseq
    %v1737 = vshrl.u32 %v1736, 7
    %v1738 = vsub.s32 %v1735, %v1737
    %v1739 = vrot.slane %v1717, %v1738
    %v1741 = vunpack.c.l.s4 1966171168
    %v1742 = vunpack.c.0.s8 %v1741
    %v1743 = vlaneseq
    %v1744 = vshrl.u32 %v1743, 7
    %v1745 = vsub.s32 %v1742, %v1744
    %v1746 = vrot.slane %v1718, %v1745
    %v1747 = vcombine.low %v1725, %v1732
    %v1748 = vcombine.low %v1739, %v1746
    %v1750 = vunpack.c.l.s4 1966171168
    %v1751 = vunpack.c.0.s8 %v1750
    %v1752 = vlaneseq
    %v1753 = vshrl.u32 %v1752, 7
    %v1754 = vsub.s32 %v1751, %v1753
    %v1755 = vrot.slane %v1747, %v1754
    %v1757 = vunpack.c.l.s4 1966171168
    %v1758 = vunpack.c.0.s8 %v1757
    %v1759 = vlaneseq
    %v1760 = vshrl.u32 %v1759, 7
    %v1761 = vsub.s32 %v1758, %v1760
    %v1762 = vrot.slane %v1748, %v1761
    %v1763 = vcombine.low %v1755, %v1762
    %v1764 = vcombine.low %v865, %v869
    %v1765 = vcombine.low %v873, %v877
    %v1766 = vcombine.low %v881, %v885
    %v1767 = vcombine.low %v889, %v893
    %v1769 = vunpack.c.l.s4 1966171168
    %v1770 = vunpack.c.0.s8 %v1769
    %v1771 = vlaneseq
    %v1772 = vshrl.u32 %v1771, 7
    %v1773 = vsub.s32 %v1770, %v1772
    %v1774 = vrot.slane %v1764, %v1773
    %v1776 = vunpack.c.l.s4 1966171168
    %v1777 = vunpack.c.0.s8 %v1776
    %v1778 = vlaneseq
    %v1779 = vshrl.u32 %v1778, 7
    %v1780 = vsub.s32 %v1777, %v1779
    %v1781 = vrot.slane %v1765, %v1780
    %v1783 = vunpack.c.l.s4 1966171168
    %v1784 = vunpack.c.0.s8 %v1783
    %v1785 = vlaneseq
    %v1786 = vshrl.u32 %v1785, 7
    %v1787 = vsub.s32 %v1784, %v1786
    %v1788 = vrot.slane %v1766, %v1787
    %v1790 = vunpack.c.l.s4 1966171168
    %v1791 = vunpack.c.0.s8 %v1790
    %v1792 = vlaneseq
    %v1793 = vshrl.u32 %v1792, 7
    %v1794 = vsub.s32 %v1791, %v1793
    %v1795 = vrot.slane %v1767, %v1794
    %v1796 = vcombine.low %v1774, %v1781
    %v1797 = vcombine.low %v1788, %v1795
    %v1799 = vunpack.c.l.s4 1966171168
    %v1800 = vunpack.c.0.s8 %v1799
    %v1801 = vlaneseq
    %v1802 = vshrl.u32 %v1801, 7
    %v1803 = vsub.s32 %v1800, %v1802
    %v1804 = vrot.slane %v1796, %v1803
    %v1806 = vunpack.c.l.s4 1966171168
    %v1807 = vunpack.c.0.s8 %v1806
    %v1808 = vlaneseq
    %v1809 = vshrl.u32 %v1808, 7
    %v1810 = vsub.s32 %v1807, %v1809
    %v1811 = vrot.slane %v1797, %v1810
    %v1812 = vcombine.low %v1804, %v1811
    %v1813 = vcombine.low %v897, %v901
    %v1814 = vcombine.low %v905, %v909
    %v1815 = vcombine.low %v913, %v917
    %v1816 = vcombine.low %v921, %v925
    %v1818 = vunpack.c.l.s4 1966171168
    %v1819 = vunpack.c.0.s8 %v1818
    %v1820 = vlaneseq
    %v1821 = vshrl.u32 %v1820, 7
    %v1822 = vsub.s32 %v1819, %v1821
    %v1823 = vrot.slane %v1813, %v1822
    %v1825 = vunpack.c.l.s4 1966171168
    %v1826 = vunpack.c.0.s8 %v1825
    %v1827 = vlaneseq
    %v1828 = vshrl.u32 %v1827, 7
    %v1829 = vsub.s32 %v1826, %v1828
    %v1830 = vrot.slane %v1814, %v1829
    %v1832 = vunpack.c.l.s4 1966171168
    %v1833 = vunpack.c.0.s8 %v1832
    %v1834 = vlaneseq
    %v1835 = vshrl.u32 %v1834, 7
    %v1836 = vsub.s32 %v1833, %v1835
    %v1837 = vrot.slane %v1815, %v1836
    %v1839 = vunpack.c.l.s4 1966171168
    %v1840 = vunpack.c.0.s8 %v1839
    %v1841 = vlaneseq
    %v1842 = vshrl.u32 %v1841, 7
    %v1843 = vsub.s32 %v1840, %v1842
    %v1844 = vrot.slane %v1816, %v1843
    %v1845 = vcombine.low %v1823, %v1830
    %v1846 = vcombine.low %v1837, %v1844
    %v1848 = vunpack.c.l.s4 1966171168
    %v1849 = vunpack.c.0.s8 %v1848
    %v1850 = vlaneseq
    %v1851 = vshrl.u32 %v1850, 7
    %v1852 = vsub.s32 %v1849, %v1851
    %v1853 = vrot.slane %v1845, %v1852
    %v1855 = vunpack.c.l.s4 1966171168
    %v1856 = vunpack.c.0.s8 %v1855
    %v1857 = vlaneseq
    %v1858 = vshrl.u32 %v1857, 7
    %v1859 = vsub.s32 %v1856, %v1858
    %v1860 = vrot.slane %v1846, %v1859
    %v1861 = vcombine.low %v1853, %v1860
    %v1862 = vcombine.low %v929, %v933
    %v1863 = vcombine.low %v937, %v941
    %v1864 = vcombine.low %v945, %v949
    %v1865 = vcombine.low %v953, %v957
    %v1867 = vunpack.c.l.s4 1966171168
    %v1868 = vunpack.c.0.s8 %v1867
    %v1869 = vlaneseq
    %v1870 = vshrl.u32 %v1869, 7
    %v1871 = vsub.s32 %v1868, %v1870
    %v1872 = vrot.slane %v1862, %v1871
    %v1874 = vunpack.c.l.s4 1966171168
    %v1875 = vunpack.c.0.s8 %v1874
    %v1876 = vlaneseq
    %v1877 = vshrl.u32 %v1876, 7
    %v1878 = vsub.s32 %v1875, %v1877
    %v1879 = vrot.slane %v1863, %v1878
    %v1881 = vunpack.c.l.s4 1966171168
    %v1882 = vunpack.c.0.s8 %v1881
    %v1883 = vlaneseq
    %v1884 = vshrl.u32 %v1883, 7
    %v1885 = vsub.s32 %v1882, %v1884
    %v1886 = vrot.slane %v1864, %v1885
    %v1888 = vunpack.c.l.s4 1966171168
    %v1889 = vunpack.c.0.s8 %v1888
    %v1890 = vlaneseq
    %v1891 = vshrl.u32 %v1890, 7
    %v1892 = vsub.s32 %v1889, %v1891
    %v1893 = vrot.slane %v1865, %v1892
    %v1894 = vcombine.low %v1872, %v1879
    %v1895 = vcombine.low %v1886, %v1893
    %v1897 = vunpack.c.l.s4 1966171168
    %v1898 = vunpack.c.0.s8 %v1897
    %v1899 = vlaneseq
    %v1900 = vshrl.u32 %v1899, 7
    %v1901 = vsub.s32 %v1898, %v1900
    %v1902 = vrot.slane %v1894, %v1901
    %v1904 = vunpack.c.l.s4 1966171168
    %v1905 = vunpack.c.0.s8 %v1904
    %v1906 = vlaneseq
    %v1907 = vshrl.u32 %v1906, 7
    %v1908 = vsub.s32 %v1905, %v1907
    %v1909 = vrot.slane %v1895, %v1908
    %v1910 = vcombine.low %v1902, %v1909
    %v1911 = vcombine.low %v961, %v965
    %v1912 = vcombine.low %v969, %v973
    %v1913 = vcombine.low %v977, %v981
    %v1914 = vcombine.low %v985, %v989
    %v1916 = vunpack.c.l.s4 1966171168
    %v1917 = vunpack.c.0.s8 %v1916
    %v1918 = vlaneseq
    %v1919 = vshrl.u32 %v1918, 7
    %v1920 = vsub.s32 %v1917, %v1919
    %v1921 = vrot.slane %v1911, %v1920
    %v1923 = vunpack.c.l.s4 1966171168
    %v1924 = vunpack.c.0.s8 %v1923
    %v1925 = vlaneseq
    %v1926 = vshrl.u32 %v1925, 7
    %v1927 = vsub.s32 %v1924, %v1926
    %v1928 = vrot.slane %v1912, %v1927
    %v1930 = vunpack.c.l.s4 1966171168
    %v1931 = vunpack.c.0.s8 %v1930
    %v1932 = vlaneseq
    %v1933 = vshrl.u32 %v1932, 7
    %v1934 = vsub.s32 %v1931, %v1933
    %v1935 = vrot.slane %v1913, %v1934
    %v1937 = vunpack.c.l.s4 1966171168
    %v1938 = vunpack.c.0.s8 %v1937
    %v1939 = vlaneseq
    %v1940 = vshrl.u32 %v1939, 7
    %v1941 = vsub.s32 %v1938, %v1940
    %v1942 = vrot.slane %v1914, %v1941
    %v1943 = vcombine.low %v1921, %v1928
    %v1944 = vcombine.low %v1935, %v1942
    %v1946 = vunpack.c.l.s4 1966171168
    %v1947 = vunpack.c.0.s8 %v1946
    %v1948 = vlaneseq
    %v1949 = vshrl.u32 %v1948, 7
    %v1950 = vsub.s32 %v1947, %v1949
    %v1951 = vrot.slane %v1943, %v1950
    %v1953 = vunpack.c.l.s4 1966171168
    %v1954 = vunpack.c.0.s8 %v1953
    %v1955 = vlaneseq
    %v1956 = vshrl.u32 %v1955, 7
    %v1957 = vsub.s32 %v1954, %v1956
    %v1958 = vrot.slane %v1944, %v1957
    %v1959 = vcombine.low %v1951, %v1958
    %v1960 = vcombine.low %v993, %v997
    %v1961 = vcombine.low %v1001, %v1005
    %v1962 = vcombine.low %v1009, %v1013
    %v1963 = vcombine.low %v1017, %v1021
    %v1965 = vunpack.c.l.s4 1966171168
    %v1966 = vunpack.c.0.s8 %v1965
    %v1967 = vlaneseq
    %v1968 = vshrl.u32 %v1967, 7
    %v1969 = vsub.s32 %v1966, %v1968
    %v1970 = vrot.slane %v1960, %v1969
    %v1972 = vunpack.c.l.s4 1966171168
    %v1973 = vunpack.c.0.s8 %v1972
    %v1974 = vlaneseq
    %v1975 = vshrl.u32 %v1974, 7
    %v1976 = vsub.s32 %v1973, %v1975
    %v1977 = vrot.slane %v1961, %v1976
    %v1979 = vunpack.c.l.s4 1966171168
    %v1980 = vunpack.c.0.s8 %v1979
    %v1981 = vlaneseq
    %v1982 = vshrl.u32 %v1981, 7
    %v1983 = vsub.s32 %v1980, %v1982
    %v1984 = vrot.slane %v1962, %v1983
    %v1986 = vunpack.c.l.s4 1966171168
    %v1987 = vunpack.c.0.s8 %v1986
    %v1988 = vlaneseq
    %v1989 = vshrl.u32 %v1988, 7
    %v1990 = vsub.s32 %v1987, %v1989
    %v1991 = vrot.slane %v1963, %v1990
    %v1992 = vcombine.low %v1970, %v1977
    %v1993 = vcombine.low %v1984, %v1991
    %v1995 = vunpack.c.l.s4 1966171168
    %v1996 = vunpack.c.0.s8 %v1995
    %v1997 = vlaneseq
    %v1998 = vshrl.u32 %v1997, 7
    %v1999 = vsub.s32 %v1996, %v1998
    %v2000 = vrot.slane %v1992, %v1999
    %v2002 = vunpack.c.l.s4 1966171168
    %v2003 = vunpack.c.0.s8 %v2002
    %v2004 = vlaneseq
    %v2005 = vshrl.u32 %v2004, 7
    %v2006 = vsub.s32 %v2003, %v2005
    %v2007 = vrot.slane %v1993, %v2006
    %v2008 = vcombine.low %v2000, %v2007
    %v2009 = vcombine.low %v1025, %v1029
    %v2010 = vcombine.low %v1033, %v1037
    %v2011 = vcombine.low %v1041, %v1045
    %v2012 = vcombine.low %v1049, %v1053
    %v2014 = vunpack.c.l.s4 1966171168
    %v2015 = vunpack.c.0.s8 %v2014
    %v2016 = vlaneseq
    %v2017 = vshrl.u32 %v2016, 7
    %v2018 = vsub.s32 %v2015, %v2017
    %v2019 = vrot.slane %v2009, %v2018
    %v2021 = vunpack.c.l.s4 1966171168
    %v2022 = vunpack.c.0.s8 %v2021
    %v2023 = vlaneseq
    %v2024 = vshrl.u32 %v2023, 7
    %v2025 = vsub.s32 %v2022, %v2024
    %v2026 = vrot.slane %v2010, %v2025
    %v2028 = vunpack.c.l.s4 1966171168
    %v2029 = vunpack.c.0.s8 %v2028
    %v2030 = vlaneseq
    %v2031 = vshrl.u32 %v2030, 7
    %v2032 = vsub.s32 %v2029, %v2031
    %v2033 = vrot.slane %v2011, %v2032
    %v2035 = vunpack.c.l.s4 1966171168
    %v2036 = vunpack.c.0.s8 %v2035
    %v2037 = vlaneseq
    %v2038 = vshrl.u32 %v2037, 7
    %v2039 = vsub.s32 %v2036, %v2038
    %v2040 = vrot.slane %v2012, %v2039
    %v2041 = vcombine.low %v2019, %v2026
    %v2042 = vcombine.low %v2033, %v2040
    %v2044 = vunpack.c.l.s4 1966171168
    %v2045 = vunpack.c.0.s8 %v2044
    %v2046 = vlaneseq
    %v2047 = vshrl.u32 %v2046, 7
    %v2048 = vsub.s32 %v2045, %v2047
    %v2049 = vrot.slane %v2041, %v2048
    %v2051 = vunpack.c.l.s4 1966171168
    %v2052 = vunpack.c.0.s8 %v2051
    %v2053 = vlaneseq
    %v2054 = vshrl.u32 %v2053, 7
    %v2055 = vsub.s32 %v2052, %v2054
    %v2056 = vrot.slane %v2042, %v2055
    %v2057 = vcombine.low %v2049, %v2056
    %v2058 = vcombine.low %v1057, %v1061
    %v2059 = vcombine.low %v1065, %v1069
    %v2060 = vcombine.low %v1073, %v1077
    %v2061 = vcombine.low %v1081, %v1085
    %v2063 = vunpack.c.l.s4 1966171168
    %v2064 = vunpack.c.0.s8 %v2063
    %v2065 = vlaneseq
    %v2066 = vshrl.u32 %v2065, 7
    %v2067 = vsub.s32 %v2064, %v2066
    %v2068 = vrot.slane %v2058, %v2067
    %v2070 = vunpack.c.l.s4 1966171168
    %v2071 = vunpack.c.0.s8 %v2070
    %v2072 = vlaneseq
    %v2073 = vshrl.u32 %v2072, 7
    %v2074 = vsub.s32 %v2071, %v2073
    %v2075 = vrot.slane %v2059, %v2074
    %v2077 = vunpack.c.l.s4 1966171168
    %v2078 = vunpack.c.0.s8 %v2077
    %v2079 = vlaneseq
    %v2080 = vshrl.u32 %v2079, 7
    %v2081 = vsub.s32 %v2078, %v2080
    %v2082 = vrot.slane %v2060, %v2081
    %v2084 = vunpack.c.l.s4 1966171168
    %v2085 = vunpack.c.0.s8 %v2084
    %v2086 = vlaneseq
    %v2087 = vshrl.u32 %v2086, 7
    %v2088 = vsub.s32 %v2085, %v2087
    %v2089 = vrot.slane %v2061, %v2088
    %v2090 = vcombine.low %v2068, %v2075
    %v2091 = vcombine.low %v2082, %v2089
    %v2093 = vunpack.c.l.s4 1966171168
    %v2094 = vunpack.c.0.s8 %v2093
    %v2095 = vlaneseq
    %v2096 = vshrl.u32 %v2095, 7
    %v2097 = vsub.s32 %v2094, %v2096
    %v2098 = vrot.slane %v2090, %v2097
    %v2100 = vunpack.c.l.s4 1966171168
    %v2101 = vunpack.c.0.s8 %v2100
    %v2102 = vlaneseq
    %v2103 = vshrl.u32 %v2102, 7
    %v2104 = vsub.s32 %v2101, %v2103
    %v2105 = vrot.slane %v2091, %v2104
    %v2106 = vcombine.low %v2098, %v2105
    %v2107 = vcombine.low %v1089, %v1093
    %v2108 = vcombine.low %v1097, %v1101
    %v2109 = vcombine.low %v1105, %v1109
    %v2110 = vcombine.low %v1113, %v1117
    %v2112 = vunpack.c.l.s4 1966171168
    %v2113 = vunpack.c.0.s8 %v2112
    %v2114 = vlaneseq
    %v2115 = vshrl.u32 %v2114, 7
    %v2116 = vsub.s32 %v2113, %v2115
    %v2117 = vrot.slane %v2107, %v2116
    %v2119 = vunpack.c.l.s4 1966171168
    %v2120 = vunpack.c.0.s8 %v2119
    %v2121 = vlaneseq
    %v2122 = vshrl.u32 %v2121, 7
    %v2123 = vsub.s32 %v2120, %v2122
    %v2124 = vrot.slane %v2108, %v2123
    %v2126 = vunpack.c.l.s4 1966171168
    %v2127 = vunpack.c.0.s8 %v2126
    %v2128 = vlaneseq
    %v2129 = vshrl.u32 %v2128, 7
    %v2130 = vsub.s32 %v2127, %v2129
    %v2131 = vrot.slane %v2109, %v2130
    %v2133 = vunpack.c.l.s4 1966171168
    %v2134 = vunpack.c.0.s8 %v2133
    %v2135 = vlaneseq
    %v2136 = vshrl.u32 %v2135, 7
    %v2137 = vsub.s32 %v2134, %v2136
    %v2138 = vrot.slane %v2110, %v2137
    %v2139 = vcombine.low %v2117, %v2124
    %v2140 = vcombine.low %v2131, %v2138
    %v2142 = vunpack.c.l.s4 1966171168
    %v2143 = vunpack.c.0.s8 %v2142
    %v2144 = vlaneseq
    %v2145 = vshrl.u32 %v2144, 7
    %v2146 = vsub.s32 %v2143, %v2145
    %v2147 = vrot.slane %v2139, %v2146
    %v2149 = vunpack.c.l.s4 1966171168
    %v2150 = vunpack.c.0.s8 %v2149
    %v2151 = vlaneseq
    %v2152 = vshrl.u32 %v2151, 7
    %v2153 = vsub.s32 %v2150, %v2152
    %v2154 = vrot.slane %v2140, %v2153
    %v2155 = vcombine.low %v2147, %v2154
    %v2156 = vcombine.low %v1121, %v1125
    %v2157 = vcombine.low %v1129, %v1133
    %v2158 = vcombine.low %v1137, %v1141
    %v2159 = vcombine.low %v1145, %v1149
    %v2161 = vunpack.c.l.s4 1966171168
    %v2162 = vunpack.c.0.s8 %v2161
    %v2163 = vlaneseq
    %v2164 = vshrl.u32 %v2163, 7
    %v2165 = vsub.s32 %v2162, %v2164
    %v2166 = vrot.slane %v2156, %v2165
    %v2168 = vunpack.c.l.s4 1966171168
    %v2169 = vunpack.c.0.s8 %v2168
    %v2170 = vlaneseq
    %v2171 = vshrl.u32 %v2170, 7
    %v2172 = vsub.s32 %v2169, %v2171
    %v2173 = vrot.slane %v2157, %v2172
    %v2175 = vunpack.c.l.s4 1966171168
    %v2176 = vunpack.c.0.s8 %v2175
    %v2177 = vlaneseq
    %v2178 = vshrl.u32 %v2177, 7
    %v2179 = vsub.s32 %v2176, %v2178
    %v2180 = vrot.slane %v2158, %v2179
    %v2182 = vunpack.c.l.s4 1966171168
    %v2183 = vunpack.c.0.s8 %v2182
    %v2184 = vlaneseq
    %v2185 = vshrl.u32 %v2184, 7
    %v2186 = vsub.s32 %v2183, %v2185
    %v2187 = vrot.slane %v2159, %v2186
    %v2188 = vcombine.low %v2166, %v2173
    %v2189 = vcombine.low %v2180, %v2187
    %v2191 = vunpack.c.l.s4 1966171168
    %v2192 = vunpack.c.0.s8 %v2191
    %v2193 = vlaneseq
    %v2194 = vshrl.u32 %v2193, 7
    %v2195 = vsub.s32 %v2192, %v2194
    %v2196 = vrot.slane %v2188, %v2195
    %v2198 = vunpack.c.l.s4 1966171168
    %v2199 = vunpack.c.0.s8 %v2198
    %v2200 = vlaneseq
    %v2201 = vshrl.u32 %v2200, 7
    %v2202 = vsub.s32 %v2199, %v2201
    %v2203 = vrot.slane %v2189, %v2202
    %v2204 = vcombine.low %v2196, %v2203
    %v2205 = vcombine.low %v1153, %v1157
    %v2206 = vcombine.low %v1161, %v1165
    %v2207 = vcombine.low %v1169, %v1173
    %v2208 = vcombine.low %v1177, %v1181
    %v2210 = vunpack.c.l.s4 1966171168
    %v2211 = vunpack.c.0.s8 %v2210
    %v2212 = vlaneseq
    %v2213 = vshrl.u32 %v2212, 7
    %v2214 = vsub.s32 %v2211, %v2213
    %v2215 = vrot.slane %v2205, %v2214
    %v2217 = vunpack.c.l.s4 1966171168
    %v2218 = vunpack.c.0.s8 %v2217
    %v2219 = vlaneseq
    %v2220 = vshrl.u32 %v2219, 7
    %v2221 = vsub.s32 %v2218, %v2220
    %v2222 = vrot.slane %v2206, %v2221
    %v2224 = vunpack.c.l.s4 1966171168
    %v2225 = vunpack.c.0.s8 %v2224
    %v2226 = vlaneseq
    %v2227 = vshrl.u32 %v2226, 7
    %v2228 = vsub.s32 %v2225, %v2227
    %v2229 = vrot.slane %v2207, %v2228
    %v2231 = vunpack.c.l.s4 1966171168
    %v2232 = vunpack.c.0.s8 %v2231
    %v2233 = vlaneseq
    %v2234 = vshrl.u32 %v2233, 7
    %v2235 = vsub.s32 %v2232, %v2234
    %v2236 = vrot.slane %v2208, %v2235
    %v2237 = vcombine.low %v2215, %v2222
    %v2238 = vcombine.low %v2229, %v2236
    %v2240 = vunpack.c.l.s4 1966171168
    %v2241 = vunpack.c.0.s8 %v2240
    %v2242 = vlaneseq
    %v2243 = vshrl.u32 %v2242, 7
    %v2244 = vsub.s32 %v2241, %v2243
    %v2245 = vrot.slane %v2237, %v2244
    %v2247 = vunpack.c.l.s4 1966171168
    %v2248 = vunpack.c.0.s8 %v2247
    %v2249 = vlaneseq
    %v2250 = vshrl.u32 %v2249, 7
    %v2251 = vsub.s32 %v2248, %v2250
    %v2252 = vrot.slane %v2238, %v2251
    %v2253 = vcombine.low %v2245, %v2252
    %v2254 = vcombine.low %v1185, %v1189
    %v2255 = vcombine.low %v1193, %v1197
    %v2256 = vcombine.low %v1201, %v1205
    %v2257 = vcombine.low %v1209, %v1213
    %v2259 = vunpack.c.l.s4 1966171168
    %v2260 = vunpack.c.0.s8 %v2259
    %v2261 = vlaneseq
    %v2262 = vshrl.u32 %v2261, 7
    %v2263 = vsub.s32 %v2260, %v2262
    %v2264 = vrot.slane %v2254, %v2263
    %v2266 = vunpack.c.l.s4 1966171168
    %v2267 = vunpack.c.0.s8 %v2266
    %v2268 = vlaneseq
    %v2269 = vshrl.u32 %v2268, 7
    %v2270 = vsub.s32 %v2267, %v2269
    %v2271 = vrot.slane %v2255, %v2270
    %v2273 = vunpack.c.l.s4 1966171168
    %v2274 = vunpack.c.0.s8 %v2273
    %v2275 = vlaneseq
    %v2276 = vshrl.u32 %v2275, 7
    %v2277 = vsub.s32 %v2274, %v2276
    %v2278 = vrot.slane %v2256, %v2277
    %v2280 = vunpack.c.l.s4 1966171168
    %v2281 = vunpack.c.0.s8 %v2280
    %v2282 = vlaneseq
    %v2283 = vshrl.u32 %v2282, 7
    %v2284 = vsub.s32 %v2281, %v2283
    %v2285 = vrot.slane %v2257, %v2284
    %v2286 = vcombine.low %v2264, %v2271
    %v2287 = vcombine.low %v2278, %v2285
    %v2289 = vunpack.c.l.s4 1966171168
    %v2290 = vunpack.c.0.s8 %v2289
    %v2291 = vlaneseq
    %v2292 = vshrl.u32 %v2291, 7
    %v2293 = vsub.s32 %v2290, %v2292
    %v2294 = vrot.slane %v2286, %v2293
    %v2296 = vunpack.c.l.s4 1966171168
    %v2297 = vunpack.c.0.s8 %v2296
    %v2298 = vlaneseq
    %v2299 = vshrl.u32 %v2298, 7
    %v2300 = vsub.s32 %v2297, %v2299
    %v2301 = vrot.slane %v2287, %v2300
    %v2302 = vcombine.low %v2294, %v2301
    %v2303 = vcombine.low %v1217, %v1221
    %v2304 = vcombine.low %v1225, %v1229
    %v2305 = vcombine.low %v1233, %v1237
    %v2306 = vcombine.low %v1241, %v1245
    %v2308 = vunpack.c.l.s4 1966171168
    %v2309 = vunpack.c.0.s8 %v2308
    %v2310 = vlaneseq
    %v2311 = vshrl.u32 %v2310, 7
    %v2312 = vsub.s32 %v2309, %v2311
    %v2313 = vrot.slane %v2303, %v2312
    %v2315 = vunpack.c.l.s4 1966171168
    %v2316 = vunpack.c.0.s8 %v2315
    %v2317 = vlaneseq
    %v2318 = vshrl.u32 %v2317, 7
    %v2319 = vsub.s32 %v2316, %v2318
    %v2320 = vrot.slane %v2304, %v2319
    %v2322 = vunpack.c.l.s4 1966171168
    %v2323 = vunpack.c.0.s8 %v2322
    %v2324 = vlaneseq
    %v2325 = vshrl.u32 %v2324, 7
    %v2326 = vsub.s32 %v2323, %v2325
    %v2327 = vrot.slane %v2305, %v2326
    %v2329 = vunpack.c.l.s4 1966171168
    %v2330 = vunpack.c.0.s8 %v2329
    %v2331 = vlaneseq
    %v2332 = vshrl.u32 %v2331, 7
    %v2333 = vsub.s32 %v2330, %v2332
    %v2334 = vrot.slane %v2306, %v2333
    %v2335 = vcombine.low %v2313, %v2320
    %v2336 = vcombine.low %v2327, %v2334
    %v2338 = vunpack.c.l.s4 1966171168
    %v2339 = vunpack.c.0.s8 %v2338
    %v2340 = vlaneseq
    %v2341 = vshrl.u32 %v2340, 7
    %v2342 = vsub.s32 %v2339, %v2341
    %v2343 = vrot.slane %v2335, %v2342
    %v2345 = vunpack.c.l.s4 1966171168
    %v2346 = vunpack.c.0.s8 %v2345
    %v2347 = vlaneseq
    %v2348 = vshrl.u32 %v2347, 7
    %v2349 = vsub.s32 %v2346, %v2348
    %v2350 = vrot.slane %v2336, %v2349
    %v2351 = vcombine.low %v2343, %v2350
    %v2352 = vcombine.low %v1249, %v1253
    %v2353 = vcombine.low %v1257, %v1261
    %v2354 = vcombine.low %v1265, %v1269
    %v2355 = vcombine.low %v1273, %v1277
    %v2357 = vunpack.c.l.s4 1966171168
    %v2358 = vunpack.c.0.s8 %v2357
    %v2359 = vlaneseq
    %v2360 = vshrl.u32 %v2359, 7
    %v2361 = vsub.s32 %v2358, %v2360
    %v2362 = vrot.slane %v2352, %v2361
    %v2364 = vunpack.c.l.s4 1966171168
    %v2365 = vunpack.c.0.s8 %v2364
    %v2366 = vlaneseq
    %v2367 = vshrl.u32 %v2366, 7
    %v2368 = vsub.s32 %v2365, %v2367
    %v2369 = vrot.slane %v2353, %v2368
    %v2371 = vunpack.c.l.s4 1966171168
    %v2372 = vunpack.c.0.s8 %v2371
    %v2373 = vlaneseq
    %v2374 = vshrl.u32 %v2373, 7
    %v2375 = vsub.s32 %v2372, %v2374
    %v2376 = vrot.slane %v2354, %v2375
    %v2378 = vunpack.c.l.s4 1966171168
    %v2379 = vunpack.c.0.s8 %v2378
    %v2380 = vlaneseq
    %v2381 = vshrl.u32 %v2380, 7
    %v2382 = vsub.s32 %v2379, %v2381
    %v2383 = vrot.slane %v2355, %v2382
    %v2384 = vcombine.low %v2362, %v2369
    %v2385 = vcombine.low %v2376, %v2383
    %v2387 = vunpack.c.l.s4 1966171168
    %v2388 = vunpack.c.0.s8 %v2387
    %v2389 = vlaneseq
    %v2390 = vshrl.u32 %v2389, 7
    %v2391 = vsub.s32 %v2388, %v2390
    %v2392 = vrot.slane %v2384, %v2391
    %v2394 = vunpack.c.l.s4 1966171168
    %v2395 = vunpack.c.0.s8 %v2394
    %v2396 = vlaneseq
    %v2397 = vshrl.u32 %v2396, 7
    %v2398 = vsub.s32 %v2395, %v2397
    %v2399 = vrot.slane %v2385, %v2398
    %v2400 = vcombine.low %v2392, %v2399
    %v2401 = vcombine.low %v1281, %v1285
    %v2402 = vcombine.low %v1289, %v1293
    %v2403 = vcombine.low %v1297, %v1301
    %v2404 = vcombine.low %v1305, %v1309
    %v2406 = vunpack.c.l.s4 1966171168
    %v2407 = vunpack.c.0.s8 %v2406
    %v2408 = vlaneseq
    %v2409 = vshrl.u32 %v2408, 7
    %v2410 = vsub.s32 %v2407, %v2409
    %v2411 = vrot.slane %v2401, %v2410
    %v2413 = vunpack.c.l.s4 1966171168
    %v2414 = vunpack.c.0.s8 %v2413
    %v2415 = vlaneseq
    %v2416 = vshrl.u32 %v2415, 7
    %v2417 = vsub.s32 %v2414, %v2416
    %v2418 = vrot.slane %v2402, %v2417
    %v2420 = vunpack.c.l.s4 1966171168
    %v2421 = vunpack.c.0.s8 %v2420
    %v2422 = vlaneseq
    %v2423 = vshrl.u32 %v2422, 7
    %v2424 = vsub.s32 %v2421, %v2423
    %v2425 = vrot.slane %v2403, %v2424
    %v2427 = vunpack.c.l.s4 1966171168
    %v2428 = vunpack.c.0.s8 %v2427
    %v2429 = vlaneseq
    %v2430 = vshrl.u32 %v2429, 7
    %v2431 = vsub.s32 %v2428, %v2430
    %v2432 = vrot.slane %v2404, %v2431
    %v2433 = vcombine.low %v2411, %v2418
    %v2434 = vcombine.low %v2425, %v2432
    %v2436 = vunpack.c.l.s4 1966171168
    %v2437 = vunpack.c.0.s8 %v2436
    %v2438 = vlaneseq
    %v2439 = vshrl.u32 %v2438, 7
    %v2440 = vsub.s32 %v2437, %v2439
    %v2441 = vrot.slane %v2433, %v2440
    %v2443 = vunpack.c.l.s4 1966171168
    %v2444 = vunpack.c.0.s8 %v2443
    %v2445 = vlaneseq
    %v2446 = vshrl.u32 %v2445, 7
    %v2447 = vsub.s32 %v2444, %v2446
    %v2448 = vrot.slane %v2434, %v2447
    %v2449 = vcombine.low %v2441, %v2448
    %v2450 = vcombine.low %v1313, %v1317
    %v2451 = vcombine.low %v1321, %v1325
    %v2452 = vcombine.low %v1329, %v1333
    %v2453 = vcombine.low %v1337, %v1341
    %v2455 = vunpack.c.l.s4 1966171168
    %v2456 = vunpack.c.0.s8 %v2455
    %v2457 = vlaneseq
    %v2458 = vshrl.u32 %v2457, 7
    %v2459 = vsub.s32 %v2456, %v2458
    %v2460 = vrot.slane %v2450, %v2459
    %v2462 = vunpack.c.l.s4 1966171168
    %v2463 = vunpack.c.0.s8 %v2462
    %v2464 = vlaneseq
    %v2465 = vshrl.u32 %v2464, 7
    %v2466 = vsub.s32 %v2463, %v2465
    %v2467 = vrot.slane %v2451, %v2466
    %v2469 = vunpack.c.l.s4 1966171168
    %v2470 = vunpack.c.0.s8 %v2469
    %v2471 = vlaneseq
    %v2472 = vshrl.u32 %v2471, 7
    %v2473 = vsub.s32 %v2470, %v2472
    %v2474 = vrot.slane %v2452, %v2473
    %v2476 = vunpack.c.l.s4 1966171168
    %v2477 = vunpack.c.0.s8 %v2476
    %v2478 = vlaneseq
    %v2479 = vshrl.u32 %v2478, 7
    %v2480 = vsub.s32 %v2477, %v2479
    %v2481 = vrot.slane %v2453, %v2480
    %v2482 = vcombine.low %v2460, %v2467
    %v2483 = vcombine.low %v2474, %v2481
    %v2485 = vunpack.c.l.s4 1966171168
    %v2486 = vunpack.c.0.s8 %v2485
    %v2487 = vlaneseq
    %v2488 = vshrl.u32 %v2487, 7
    %v2489 = vsub.s32 %v2486, %v2488
    %v2490 = vrot.slane %v2482, %v2489
    %v2492 = vunpack.c.l.s4 1966171168
    %v2493 = vunpack.c.0.s8 %v2492
    %v2494 = vlaneseq
    %v2495 = vshrl.u32 %v2494, 7
    %v2496 = vsub.s32 %v2493, %v2495
    %v2497 = vrot.slane %v2483, %v2496
    %v2498 = vcombine.low %v2490, %v2497
    %v2499 = vcombine.low %v1345, %v1349
    %v2500 = vcombine.low %v1353, %v1357
    %v2501 = vcombine.low %v1361, %v1365
    %v2502 = vcombine.low %v1369, %v1373
    %v2504 = vunpack.c.l.s4 1966171168
    %v2505 = vunpack.c.0.s8 %v2504
    %v2506 = vlaneseq
    %v2507 = vshrl.u32 %v2506, 7
    %v2508 = vsub.s32 %v2505, %v2507
    %v2509 = vrot.slane %v2499, %v2508
    %v2511 = vunpack.c.l.s4 1966171168
    %v2512 = vunpack.c.0.s8 %v2511
    %v2513 = vlaneseq
    %v2514 = vshrl.u32 %v2513, 7
    %v2515 = vsub.s32 %v2512, %v2514
    %v2516 = vrot.slane %v2500, %v2515
    %v2518 = vunpack.c.l.s4 1966171168
    %v2519 = vunpack.c.0.s8 %v2518
    %v2520 = vlaneseq
    %v2521 = vshrl.u32 %v2520, 7
    %v2522 = vsub.s32 %v2519, %v2521
    %v2523 = vrot.slane %v2501, %v2522
    %v2525 = vunpack.c.l.s4 1966171168
    %v2526 = vunpack.c.0.s8 %v2525
    %v2527 = vlaneseq
    %v2528 = vshrl.u32 %v2527, 7
    %v2529 = vsub.s32 %v2526, %v2528
    %v2530 = vrot.slane %v2502, %v2529
    %v2531 = vcombine.low %v2509, %v2516
    %v2532 = vcombine.low %v2523, %v2530
    %v2534 = vunpack.c.l.s4 1966171168
    %v2535 = vunpack.c.0.s8 %v2534
    %v2536 = vlaneseq
    %v2537 = vshrl.u32 %v2536, 7
    %v2538 = vsub.s32 %v2535, %v2537
    %v2539 = vrot.slane %v2531, %v2538
    %v2541 = vunpack.c.l.s4 1966171168
    %v2542 = vunpack.c.0.s8 %v2541
    %v2543 = vlaneseq
    %v2544 = vshrl.u32 %v2543, 7
    %v2545 = vsub.s32 %v2542, %v2544
    %v2546 = vrot.slane %v2532, %v2545
    %v2547 = vcombine.low %v2539, %v2546
    %v2548 = vcombine.low %v1377, %v1381
    %v2549 = vcombine.low %v1385, %v1389
    %v2550 = vcombine.low %v1393, %v1397
    %v2551 = vcombine.low %v1401, %v1405
    %v2553 = vunpack.c.l.s4 1966171168
    %v2554 = vunpack.c.0.s8 %v2553
    %v2555 = vlaneseq
    %v2556 = vshrl.u32 %v2555, 7
    %v2557 = vsub.s32 %v2554, %v2556
    %v2558 = vrot.slane %v2548, %v2557
    %v2560 = vunpack.c.l.s4 1966171168
    %v2561 = vunpack.c.0.s8 %v2560
    %v2562 = vlaneseq
    %v2563 = vshrl.u32 %v2562, 7
    %v2564 = vsub.s32 %v2561, %v2563
    %v2565 = vrot.slane %v2549, %v2564
    %v2567 = vunpack.c.l.s4 1966171168
    %v2568 = vunpack.c.0.s8 %v2567
    %v2569 = vlaneseq
    %v2570 = vshrl.u32 %v2569, 7
    %v2571 = vsub.s32 %v2568, %v2570
    %v2572 = vrot.slane %v2550, %v2571
    %v2574 = vunpack.c.l.s4 1966171168
    %v2575 = vunpack.c.0.s8 %v2574
    %v2576 = vlaneseq
    %v2577 = vshrl.u32 %v2576, 7
    %v2578 = vsub.s32 %v2575, %v2577
    %v2579 = vrot.slane %v2551, %v2578
    %v2580 = vcombine.low %v2558, %v2565
    %v2581 = vcombine.low %v2572, %v2579
    %v2583 = vunpack.c.l.s4 1966171168
    %v2584 = vunpack.c.0.s8 %v2583
    %v2585 = vlaneseq
    %v2586 = vshrl.u32 %v2585, 7
    %v2587 = vsub.s32 %v2584, %v2586
    %v2588 = vrot.slane %v2580, %v2587
    %v2590 = vunpack.c.l.s4 1966171168
    %v2591 = vunpack.c.0.s8 %v2590
    %v2592 = vlaneseq
    %v2593 = vshrl.u32 %v2592, 7
    %v2594 = vsub.s32 %v2591, %v2593
    %v2595 = vrot.slane %v2581, %v2594
    %v2596 = vcombine.low %v2588, %v2595
    %v2597 = vcombine.low %v1409, %v1413
    %v2598 = vcombine.low %v1417, %v1421
    %v2599 = vcombine.low %v1425, %v1429
    %v2600 = vcombine.low %v1433, %v1437
    %v2602 = vunpack.c.l.s4 1966171168
    %v2603 = vunpack.c.0.s8 %v2602
    %v2604 = vlaneseq
    %v2605 = vshrl.u32 %v2604, 7
    %v2606 = vsub.s32 %v2603, %v2605
    %v2607 = vrot.slane %v2597, %v2606
    %v2609 = vunpack.c.l.s4 1966171168
    %v2610 = vunpack.c.0.s8 %v2609
    %v2611 = vlaneseq
    %v2612 = vshrl.u32 %v2611, 7
    %v2613 = vsub.s32 %v2610, %v2612
    %v2614 = vrot.slane %v2598, %v2613
    %v2616 = vunpack.c.l.s4 1966171168
    %v2617 = vunpack.c.0.s8 %v2616
    %v2618 = vlaneseq
    %v2619 = vshrl.u32 %v2618, 7
    %v2620 = vsub.s32 %v2617, %v2619
    %v2621 = vrot.slane %v2599, %v2620
    %v2623 = vunpack.c.l.s4 1966171168
    %v2624 = vunpack.c.0.s8 %v2623
    %v2625 = vlaneseq
    %v2626 = vshrl.u32 %v2625, 7
    %v2627 = vsub.s32 %v2624, %v2626
    %v2628 = vrot.slane %v2600, %v2627
    %v2629 = vcombine.low %v2607, %v2614
    %v2630 = vcombine.low %v2621, %v2628
    %v2632 = vunpack.c.l.s4 1966171168
    %v2633 = vunpack.c.0.s8 %v2632
    %v2634 = vlaneseq
    %v2635 = vshrl.u32 %v2634, 7
    %v2636 = vsub.s32 %v2633, %v2635
    %v2637 = vrot.slane %v2629, %v2636
    %v2639 = vunpack.c.l.s4 1966171168
    %v2640 = vunpack.c.0.s8 %v2639
    %v2641 = vlaneseq
    %v2642 = vshrl.u32 %v2641, 7
    %v2643 = vsub.s32 %v2640, %v2642
    %v2644 = vrot.slane %v2630, %v2643
    %v2645 = vcombine.low %v2637, %v2644
    %v2646 = vcombine.low %v1441, %v1445
    %v2647 = vcombine.low %v1449, %v1453
    %v2648 = vcombine.low %v1457, %v1461
    %v2649 = vcombine.low %v1465, %v1469
    %v2651 = vunpack.c.l.s4 1966171168
    %v2652 = vunpack.c.0.s8 %v2651
    %v2653 = vlaneseq
    %v2654 = vshrl.u32 %v2653, 7
    %v2655 = vsub.s32 %v2652, %v2654
    %v2656 = vrot.slane %v2646, %v2655
    %v2658 = vunpack.c.l.s4 1966171168
    %v2659 = vunpack.c.0.s8 %v2658
    %v2660 = vlaneseq
    %v2661 = vshrl.u32 %v2660, 7
    %v2662 = vsub.s32 %v2659, %v2661
    %v2663 = vrot.slane %v2647, %v2662
    %v2665 = vunpack.c.l.s4 1966171168
    %v2666 = vunpack.c.0.s8 %v2665
    %v2667 = vlaneseq
    %v2668 = vshrl.u32 %v2667, 7
    %v2669 = vsub.s32 %v2666, %v2668
    %v2670 = vrot.slane %v2648, %v2669
    %v2672 = vunpack.c.l.s4 1966171168
    %v2673 = vunpack.c.0.s8 %v2672
    %v2674 = vlaneseq
    %v2675 = vshrl.u32 %v2674, 7
    %v2676 = vsub.s32 %v2673, %v2675
    %v2677 = vrot.slane %v2649, %v2676
    %v2678 = vcombine.low %v2656, %v2663
    %v2679 = vcombine.low %v2670, %v2677
    %v2681 = vunpack.c.l.s4 1966171168
    %v2682 = vunpack.c.0.s8 %v2681
    %v2683 = vlaneseq
    %v2684 = vshrl.u32 %v2683, 7
    %v2685 = vsub.s32 %v2682, %v2684
    %v2686 = vrot.slane %v2678, %v2685
    %v2688 = vunpack.c.l.s4 1966171168
    %v2689 = vunpack.c.0.s8 %v2688
    %v2690 = vlaneseq
    %v2691 = vshrl.u32 %v2690, 7
    %v2692 = vsub.s32 %v2689, %v2691
    %v2693 = vrot.slane %v2679, %v2692
    %v2694 = vcombine.low %v2686, %v2693
    %2695 = vset.pattern.permute.xlu0 0
    %2696 = vperm.xlu0 %2695, %v1518
    %v2697 = vpop.permute.xlu0 %2696
    %2698 = vset.pattern.permute.xlu0 0
    %2699 = vperm.xlu0 %2698, %v1567
    %v2700 = vpop.permute.xlu0 %2699
    %2701 = vset.pattern.permute.xlu0 0
    %2702 = vperm.xlu0 %2701, %v1616
    %v2703 = vpop.permute.xlu0 %2702
    %2704 = vset.pattern.permute.xlu0 0
    %2705 = vperm.xlu0 %2704, %v1665
    %v2706 = vpop.permute.xlu0 %2705
    %2707 = vset.pattern.permute.xlu0 0
    %2708 = vperm.xlu0 %2707, %v1714
    %v2709 = vpop.permute.xlu0 %2708
    %2710 = vset.pattern.permute.xlu0 0
    %2711 = vperm.xlu0 %2710, %v1763
    %v2712 = vpop.permute.xlu0 %2711
    %2713 = vset.pattern.permute.xlu0 0
    %2714 = vperm.xlu0 %2713, %v1812
    %v2715 = vpop.permute.xlu0 %2714
    %2716 = vset.pattern.permute.xlu0 0
    %2717 = vperm.xlu0 %2716, %v1861
    %v2718 = vpop.permute.xlu0 %2717
    %2719 = vset.pattern.permute.xlu0 0
    %2720 = vperm.xlu0 %2719, %v1910
    %v2721 = vpop.permute.xlu0 %2720
    %2722 = vset.pattern.permute.xlu0 0
    %2723 = vperm.xlu0 %2722, %v1959
    %v2724 = vpop.permute.xlu0 %2723
    %2725 = vset.pattern.permute.xlu0 0
    %2726 = vperm.xlu0 %2725, %v2008
    %v2727 = vpop.permute.xlu0 %2726
    %2728 = vset.pattern.permute.xlu0 0
    %2729 = vperm.xlu0 %2728, %v2057
    %v2730 = vpop.permute.xlu0 %2729
    %2731 = vset.pattern.permute.xlu0 0
    %2732 = vperm.xlu0 %2731, %v2106
    %v2733 = vpop.permute.xlu0 %2732
    %2734 = vset.pattern.permute.xlu0 0
    %2735 = vperm.xlu0 %2734, %v2155
    %v2736 = vpop.permute.xlu0 %2735
    %2737 = vset.pattern.permute.xlu0 0
    %2738 = vperm.xlu0 %2737, %v2204
    %v2739 = vpop.permute.xlu0 %2738
    %2740 = vset.pattern.permute.xlu0 0
    %2741 = vperm.xlu0 %2740, %v2253
    %v2742 = vpop.permute.xlu0 %2741
    %2743 = vset.pattern.permute.xlu0 0
    %2744 = vperm.xlu0 %2743, %v2302
    %v2745 = vpop.permute.xlu0 %2744
    %2746 = vset.pattern.permute.xlu0 0
    %2747 = vperm.xlu0 %2746, %v2351
    %v2748 = vpop.permute.xlu0 %2747
    %2749 = vset.pattern.permute.xlu0 0
    %2750 = vperm.xlu0 %2749, %v2400
    %v2751 = vpop.permute.xlu0 %2750
    %2752 = vset.pattern.permute.xlu0 0
    %2753 = vperm.xlu0 %2752, %v2449
    %v2754 = vpop.permute.xlu0 %2753
    %2755 = vset.pattern.permute.xlu0 0
    %2756 = vperm.xlu0 %2755, %v2498
    %v2757 = vpop.permute.xlu0 %2756
    %2758 = vset.pattern.permute.xlu0 0
    %2759 = vperm.xlu0 %2758, %v2547
    %v2760 = vpop.permute.xlu0 %2759
    %2761 = vset.pattern.permute.xlu0 0
    %2762 = vperm.xlu0 %2761, %v2596
    %v2763 = vpop.permute.xlu0 %2762
    %2764 = vset.pattern.permute.xlu0 0
    %2765 = vperm.xlu0 %2764, %v2645
    %v2766 = vpop.permute.xlu0 %2765
    %2767 = vset.pattern.permute.xlu0 0
    %2768 = vperm.xlu0 %2767, %v2694
    %v2769 = vpop.permute.xlu0 %2768
    %v2770 = vlaneseq
    %v2771 = vand.u32 %v2770, 127
    %v2772 = vlaneseq
    %v2773 = vshrl.u32 %v2772, 7
    %v2774 = vsub.s32 %v2771, %v2773
    %v2775 = vrot.slane %v2697, %v2774
    %v2776 = vadd.s32 %v2771, 4294967288
    %v2777 = vlaneseq
    %v2778 = vshrl.u32 %v2777, 7
    %v2779 = vsub.s32 %v2776, %v2778
    %v2780 = vrot.slane %v2700, %v2779
    %vm2781 = vcmask 130112
    %v2782 = vsel %vm2781, %v2780, %v2775
    %v2783 = vadd.s32 %v2771, 4294967280
    %v2784 = vlaneseq
    %v2785 = vshrl.u32 %v2784, 7
    %v2786 = vsub.s32 %v2783, %v2785
    %v2787 = vrot.slane %v2703, %v2786
    %vm2788 = vcmask 195712
    %v2789 = vsel %vm2788, %v2787, %v2782
    %v2790 = vadd.s32 %v2771, 4294967272
    %v2791 = vlaneseq
    %v2792 = vshrl.u32 %v2791, 7
    %v2793 = vsub.s32 %v2790, %v2792
    %v2794 = vrot.slane %v2706, %v2793
    %vm2795 = vcmask 261312
    %v2796 = vsel %vm2795, %v2794, %v2789
    %v2797 = vadd.s32 %v2771, 4294967264
    %v2798 = vlaneseq
    %v2799 = vshrl.u32 %v2798, 7
    %v2800 = vsub.s32 %v2797, %v2799
    %v2801 = vrot.slane %v2709, %v2800
    %vm2802 = vcmask 326912
    %v2803 = vsel %vm2802, %v2801, %v2796
    %v2804 = vadd.s32 %v2771, 4294967256
    %v2805 = vlaneseq
    %v2806 = vshrl.u32 %v2805, 7
    %v2807 = vsub.s32 %v2804, %v2806
    %v2808 = vrot.slane %v2712, %v2807
    %vm2809 = vcmask 392512
    %v2810 = vsel %vm2809, %v2808, %v2803
    %v2811 = vadd.s32 %v2771, 4294967248
    %v2812 = vlaneseq
    %v2813 = vshrl.u32 %v2812, 7
    %v2814 = vsub.s32 %v2811, %v2813
    %v2815 = vrot.slane %v2715, %v2814
    %vm2816 = vcmask 458112
    %v2817 = vsel %vm2816, %v2815, %v2810
    %v2818 = vadd.s32 %v2771, 4294967240
    %v2819 = vlaneseq
    %v2820 = vshrl.u32 %v2819, 7
    %v2821 = vsub.s32 %v2818, %v2820
    %v2822 = vrot.slane %v2718, %v2821
    %vm2823 = vcmask 523712
    %v2824 = vsel %vm2823, %v2822, %v2817
    %v2825 = vadd.s32 %v2771, 4294967232
    %v2826 = vlaneseq
    %v2827 = vshrl.u32 %v2826, 7
    %v2828 = vsub.s32 %v2825, %v2827
    %v2829 = vrot.slane %v2721, %v2828
    %vm2830 = vcmask 589312
    %v2831 = vsel %vm2830, %v2829, %v2824
    %v2832 = vadd.s32 %v2771, 4294967224
    %v2833 = vlaneseq
    %v2834 = vshrl.u32 %v2833, 7
    %v2835 = vsub.s32 %v2832, %v2834
    %v2836 = vrot.slane %v2724, %v2835
    %vm2837 = vcmask 654912
    %v2838 = vsel %vm2837, %v2836, %v2831
    %v2839 = vadd.s32 %v2771, 4294967216
    %v2840 = vlaneseq
    %v2841 = vshrl.u32 %v2840, 7
    %v2842 = vsub.s32 %v2839, %v2841
    %v2843 = vrot.slane %v2727, %v2842
    %vm2844 = vcmask 720512
    %v2845 = vsel %vm2844, %v2843, %v2838
    %v2846 = vadd.s32 %v2771, 4294967208
    %v2847 = vlaneseq
    %v2848 = vshrl.u32 %v2847, 7
    %v2849 = vsub.s32 %v2846, %v2848
    %v2850 = vrot.slane %v2730, %v2849
    %vm2851 = vcmask 786112
    %v2852 = vsel %vm2851, %v2850, %v2845
    %v2853 = vadd.s32 %v2771, 4294967200
    %v2854 = vlaneseq
    %v2855 = vshrl.u32 %v2854, 7
    %v2856 = vsub.s32 %v2853, %v2855
    %v2857 = vrot.slane %v2733, %v2856
    %vm2858 = vcmask 851712
    %v2859 = vsel %vm2858, %v2857, %v2852
    %v2860 = vadd.s32 %v2771, 4294967192
    %v2861 = vlaneseq
    %v2862 = vshrl.u32 %v2861, 7
    %v2863 = vsub.s32 %v2860, %v2862
    %v2864 = vrot.slane %v2736, %v2863
    %vm2865 = vcmask 917312
    %v2866 = vsel %vm2865, %v2864, %v2859
    %v2867 = vadd.s32 %v2771, 4294967184
    %v2868 = vlaneseq
    %v2869 = vshrl.u32 %v2868, 7
    %v2870 = vsub.s32 %v2867, %v2869
    %v2871 = vrot.slane %v2739, %v2870
    %vm2872 = vcmask 982912
    %v2873 = vsel %vm2872, %v2871, %v2866
    %v2874 = vadd.s32 %v2771, 4294967176
    %v2875 = vlaneseq
    %v2876 = vshrl.u32 %v2875, 7
    %v2877 = vsub.s32 %v2874, %v2876
    %v2878 = vrot.slane %v2742, %v2877
    %vm2879 = vcmask 1048512
    %v2880 = vsel %vm2879, %v2878, %v2873
    %v2881 = vlaneseq
    %v2882 = vshrl.u32 %v2881, 7
    %v2883 = vsub.s32 %v2771, %v2882
    %v2884 = vrot.slane %v2745, %v2883
    %v2885 = vlaneseq
    %v2886 = vshrl.u32 %v2885, 7
    %v2887 = vsub.s32 %v2776, %v2886
    %v2888 = vrot.slane %v2748, %v2887
    %v2889 = vsel %vm2781, %v2888, %v2884
    %v2890 = vlaneseq
    %v2891 = vshrl.u32 %v2890, 7
    %v2892 = vsub.s32 %v2783, %v2891
    %v2893 = vrot.slane %v2751, %v2892
    %v2894 = vsel %vm2788, %v2893, %v2889
    %v2895 = vlaneseq
    %v2896 = vshrl.u32 %v2895, 7
    %v2897 = vsub.s32 %v2790, %v2896
    %v2898 = vrot.slane %v2754, %v2897
    %v2899 = vsel %vm2795, %v2898, %v2894
    %v2900 = vlaneseq
    %v2901 = vshrl.u32 %v2900, 7
    %v2902 = vsub.s32 %v2797, %v2901
    %v2903 = vrot.slane %v2757, %v2902
    %v2904 = vsel %vm2802, %v2903, %v2899
    %v2905 = vlaneseq
    %v2906 = vshrl.u32 %v2905, 7
    %v2907 = vsub.s32 %v2804, %v2906
    %v2908 = vrot.slane %v2760, %v2907
    %v2909 = vsel %vm2809, %v2908, %v2904
    %v2910 = vlaneseq
    %v2911 = vshrl.u32 %v2910, 7
    %v2912 = vsub.s32 %v2811, %v2911
    %v2913 = vrot.slane %v2763, %v2912
    %v2914 = vsel %vm2816, %v2913, %v2909
    %v2915 = vlaneseq
    %v2916 = vshrl.u32 %v2915, 7
    %v2917 = vsub.s32 %v2818, %v2916
    %v2918 = vrot.slane %v2766, %v2917
    %v2919 = vsel %vm2823, %v2918, %v2914
    %v2920 = vlaneseq
    %v2921 = vshrl.u32 %v2920, 7
    %v2922 = vsub.s32 %v2825, %v2921
    %v2923 = vrot.slane %v2769, %v2922
    %v2924 = vsel %vm2830, %v2923, %v2919
    %v2925 = vcombine.low %v2880, %v2924
    %v2927 = vunpack.c.l.s4 1966171168
    %v2928 = vunpack.c.0.s8 %v2927
    %v2929 = vlaneseq
    %v2930 = vshrl.u32 %v2929, 7
    %v2931 = vsub.s32 %v2928, %v2930
    %v2932 = vrot.slane %v2925, %v2931
    %v2934 = vunpack.c.l.s4 1966171168
    %v2935 = vunpack.c.0.s8 %v2934
    %v2936 = vlaneseq
    %v2937 = vshrl.u32 %v2936, 7
    %v2938 = vsub.s32 %v2935, %v2937
    %v2939 = vrot.slane %v2932, %v2938
    %v2941 = vlaneseq
    %vm2942 = vcmp.ge.s32.totalorder %v2941, 0
    %vm2943 = vcmp.lt.s32.totalorder %v2941, 200
    %vm2944 = vmand %vm2942, %vm2943
    %2945 = vst.msk [vmem:[#allocation3] sm:$0x3] %vm2944, %v2939
    // Predicated region
    $region30: #{tpu_custom_call.1} parent=1 // pred_check
      _
    $region31: #{tpu_custom_call.1} parent=1 // pred_check_branch
      %2947 = sbr.rel (0) target = $region33
    $region32: #{tpu_custom_call.1} parent=1 // pred_region
      %s2949 = ssub.s32 32, 32
      %2950 = vsyncadd [#allocation4], %s2949
      %s2952 = sshll.u32 [#allocation3], 4
      %s2953 = int_to_ptr.vmem [resolvable:$true] %s2952
      %2955 = dma.vmem_to_hbm [thread:$0]  %s2953, 32, %s7, [#allocation4]
    $region33: #{tpu_custom_call.1} parent=1 // pred_fallthru
      _
    // Predicated region
    $region34: #{tpu_custom_call.1} parent=1 // pred_check
      _
    $region35: #{tpu_custom_call.1} parent=1 // pred_check_branch
      %2957 = sbr.rel (0) target = $region37
    $region36: #{tpu_custom_call.1} parent=1 // pred_region
      %2958 = dma.done [#allocation4], 32
    $region37: #{tpu_custom_call.1} parent=1 // pred_fallthru
      _
    %2959 = vsyncpa [#allocation4], 1

</llo_original>
